<compile_context>
chip_gen: v5e
topology: v5e:2x2
jax: 0.10.0
libtpu: 0.0.40
codegen_flags: <defaults>
</compile_context>

<pallas_src>
import math
import functools

import jax
import jax.numpy as jnp
from jax import lax
from jax.experimental import pallas as pl
from jax.experimental.pallas import tpu as pltpu


_INV_SQRT2 = 1.0 / math.sqrt(2.0)


# --------------------------------------------------------------------------- #
# small math helpers (used inside kernels and in the JAX references)
# --------------------------------------------------------------------------- #
def _layer_norm(v, g, b, eps=1e-5):
    # torch.nn.LayerNorm semantics: biased variance over the last dim.
    mu = jnp.mean(v, axis=-1, keepdims=True)
    d = v - mu
    var = jnp.mean(d * d, axis=-1, keepdims=True)
    return d * lax.rsqrt(var + eps) * g + b


def _gelu_exact(x):
    # torch.nn.GELU() default (approximate='none'): 0.5*x*(1+erf(x/sqrt(2))).
    return 0.5 * x * (1.0 + lax.erf(x * _INV_SQRT2))


# --------------------------------------------------------------------------- #
# feature probe: single-buffered constant blocks (pl.Buffered(1))
# --------------------------------------------------------------------------- #
def _probe_kernel(x_ref, o_ref):
    o_ref[...] = x_ref[...] + 1.0


def _probe_single_buffering():
    """Real probe (tiny pallas_call) for BlockSpec(pipeline_mode=pl.Buffered(1)).

    The blanket except is confined to this probe; production kernels never fall
    through it (review item: no silent configuration fallback on real errors).
    """
    if not hasattr(pl, "Buffered"):
        return False
    try:
        spec = pl.BlockSpec((8, 128), lambda i: (0, 0), pipeline_mode=pl.Buffered(1))
        out = pl.pallas_call(
            _probe_kernel,
            out_shape=jax.ShapeDtypeStruct((8, 128), jnp.float32),
            grid=(1,),
            in_specs=[spec],
            out_specs=pl.BlockSpec((8, 128), lambda i: (0, 0)),
        )(jnp.zeros((8, 128), jnp.float32))
        jax.block_until_ready(out)
        return True
    except Exception:   # feature probe only
        return False


_BUFFERED_SUPPORTED = None


def _single_buffer_supported():
    global _BUFFERED_SUPPORTED
    if _BUFFERED_SUPPORTED is None:
        _BUFFERED_SUPPORTED = _probe_single_buffering()
    return _BUFFERED_SUPPORTED


# --------------------------------------------------------------------------- #
# VMEM budget helpers
# --------------------------------------------------------------------------- #
_VMEM_CAP = None


def _vmem_capacity_bytes():
    global _VMEM_CAP
    if _VMEM_CAP is None:
        cap = None
        try:
            cap = getattr(pltpu.get_tpu_info(), "vmem_capacity_bytes", None)
        except Exception:   # hardware query only; never masks kernel errors
            cap = None
        _VMEM_CAP = int(cap) if cap else (64 << 20)   # conservative: v7x per-TC VMEM
    return _VMEM_CAP


def _vmem_limit(estimated_bytes):
    cap = _vmem_capacity_bytes()
    limit = int(1.25 * estimated_bytes) + (4 << 20)
    return int(max(16 << 20, min(int(0.85 * cap), limit)))


# --------------------------------------------------------------------------- #
# kernels
# --------------------------------------------------------------------------- #
def _kv_kernel(x_ref, ln1g_ref, ln1b_ref, wk_ref, wv_ref, bk_ref, bv_ref,
               k_ref, v_ref, *, heads):
    """LayerNorm1 + K/V projection for one (TR, W) row tile.

    Weights come in head-split form (heads, W, C); outputs are written
    head-major into (1, heads, TR, C) blocks -> lane-dense per-head tiles
    downstream (no in-kernel transpose, no masked lane slicing).
    """
    x = x_ref[0]                                                   # (TR, W) f32
    h = _layer_norm(x, ln1g_ref[...], ln1b_ref[...]).astype(jnp.bfloat16)
    for hh in range(heads):
        k_ref[0, hh] = (jnp.dot(h, wk_ref[hh], preferred_element_type=jnp.float32)
                        + bk_ref[hh]).astype(jnp.bfloat16)
        v_ref[0, hh] = (jnp.dot(h, wv_ref[hh], preferred_element_type=jnp.float32)
                        + bv_ref[hh]).astype(jnp.bfloat16)


def _attn_mlp_kernel(x_ref, k_ref, v_ref,
                     ln1g_ref, ln1b_ref, wq_ref, bq_ref,
                     wproj_ref, bproj_ref, ln2g_ref, ln2b_ref,
                     wfc_ref, bfc_ref, wcp_ref, bcp_ref,
                     o_ref,
                     q_scr, m_scr, l_scr, acc_scr, *, heads):
    """Flash attention over KV tiles + proj + residual + LN2 + MLP + residual.

    Grid axis 2 iterates KV tiles ("arbitrary"); q / m / l / acc live in VMEM
    scratch and persist across KV steps.  Q is (re)computed from the resident
    x tile at kv==0 (w_q is pre-scaled by 1/sqrt(C) on the host, so the torch
    q*scale, k*scale scaling is folded into the weights).
    """
    kv = pl.program_id(2)
    nk = pl.num_programs(2)
    bf16 = jnp.bfloat16

    @pl.when(kv == 0)
    def _init():
        x = x_ref[0]                                               # (TQ, W) f32
        h1 = _layer_norm(x, ln1g_ref[...], ln1b_ref[...]).astype(bf16)
        for hh in range(heads):
            qh = jnp.dot(h1, wq_ref[hh], preferred_element_type=jnp.float32) + bq_ref[hh]
            q_scr[hh] = qh.astype(bf16)                            # (TQ, C)
        m_scr[...] = jnp.full(m_scr.shape, -jnp.inf, dtype=m_scr.dtype)
        l_scr[...] = jnp.zeros(l_scr.shape, dtype=l_scr.dtype)
        acc_scr[...] = jnp.zeros(acc_scr.shape, dtype=acc_scr.dtype)

    # ---- online softmax update for this KV tile, all heads batched ---------- #
    q = q_scr[...]                                                 # (H, TQ, C) bf16
    k = k_ref[0]                                                   # (H, TK, C) bf16
    v = v_ref[0]                                                   # (H, TK, C) bf16
    s = jnp.einsum("hqc,hkc->hqk", q, k,
                   preferred_element_type=jnp.float32)             # (H, TQ, TK) f32
    m_prev = m_scr[...]
    m_new = jnp.maximum(m_prev, jnp.max(s, axis=-1, keepdims=True))
    alpha = jnp.exp(m_prev - m_new)
    p = jnp.exp(s - m_new)
    l_scr[...] = alpha * l_scr[...] + jnp.sum(p, axis=-1, keepdims=True)
    acc_scr[...] = alpha * acc_scr[...] + jnp.einsum(
        "hqk,hkc->hqc", p.astype(bf16), v, preferred_element_type=jnp.float32)
    m_scr[...] = m_new

    # ---- last KV tile: normalize, project, residual, LN2, MLP, residual ----- #
    @pl.when(kv == nk - 1)
    def _finalize():
        x = x_ref[0]                                               # (TQ, W) f32
        tq, width = x.shape
        # approx reciprocal on the EUP (deliberate ~1e-3 deviation, in tolerance)
        inv_l = pl.reciprocal(l_scr[...], approx=True)             # (H, TQ, 1)
        ctx = (acc_scr[...] * inv_l).astype(bf16)                  # (H, TQ, C)
        attn = jnp.zeros((tq, width), jnp.float32)
        for hh in range(heads):                                    # per-head proj accum
            attn = attn + jnp.dot(ctx[hh], wproj_ref[hh],
                                  preferred_element_type=jnp.float32)
        x1 = x + attn + bproj_ref[...]                             # residual, f32

        h2 = _layer_norm(x1, ln2g_ref[...], ln2b_ref[...]).astype(bf16)
        f = jnp.dot(h2, wfc_ref[...], preferred_element_type=jnp.float32) + bfc_ref[...]
        f = _gelu_exact(f).astype(bf16)                            # exact-erf GELU, f32
        mlp = jnp.dot(f, wcp_ref[...], preferred_element_type=jnp.float32) + bcp_ref[...]
        o_ref[0] = (x1 + mlp).astype(o_ref.dtype)


# --------------------------------------------------------------------------- #
# pallas_call plumbing
# --------------------------------------------------------------------------- #
def _const_spec(shape, ngrid):
    """BlockSpec for a grid-constant (weight) operand: whole array, block index 0.

    Single-buffered (pl.Buffered(1)) when supported -- the index map is constant,
    so a second pipeline buffer would be pure VMEM waste at large W.
    """
    zeros = (0,) * len(shape)
    if ngrid == 2:
        index_map = lambda b, i: zeros
    elif ngrid == 3:
        index_map = lambda b, i, j: zeros
    else:
        raise ValueError(f"unsupported grid rank {ngrid}")
    if _single_buffer_supported():
        return pl.BlockSpec(shape, index_map, pipeline_mode=pl.Buffered(1))
    return pl.BlockSpec(shape, index_map)


def _pick_tile(T, target):
    """Largest divisor of T <= target, preferring multiples of 128 (MXU / lane
    aligned), then multiples of 8; falls back to the full extent."""
    best8 = None
    for cand in range(min(target, T), 0, -1):
        if T % cand:
            continue
        if cand % 128 == 0:
            return cand
        if best8 is None and cand % 8 == 0:
            best8 = cand
    return best8 if best8 is not None else T


def _residual_block(x, p, heads, tq, tk, tr):
    B, T, W = x.shape
    assert W % heads == 0, "width must be divisible by heads"
    C = W // heads
    assert T % tq == 0 and T % tk == 0 and T % tr == 0, "tiles must divide n_ctx"
    nq, nk, nr = T // tq, T // tk, T // tr
    bf16 = jnp.bfloat16
    wbuf = 1 if _single_buffer_supported() else 2

    # ------------- stage A: LN1 + K/V projection, head-major output --------- #
    kv_weights = (p["ln1_g"], p["ln1_b"], p["w_k"], p["w_v"], p["b_k"], p["b_v"])
    vmem1 = _vmem_limit(
        2 * 4 * tr * W                    # x tile (f32, double-buffered)
        + 2 * 2 * 2 * tr * W              # k / v output tiles (bf16, double-buffered)
        + wbuf * 2 * 2 * W * W            # w_k + w_v (bf16)
        + 8 * 4 * tr * W)                 # f32 intermediates headroom
    k, v = pl.pallas_call(
        functools.partial(_kv_kernel, heads=heads),
        out_shape=[jax.ShapeDtypeStruct((B, heads, T, C), bf16)] * 2,
        grid=(B, nr),
        in_specs=[pl.BlockSpec((1, tr, W), lambda b, i: (b, i, 0))]
                 + [_const_spec(t.shape, 2) for t in kv_weights],
        out_specs=[pl.BlockSpec((1, heads, tr, C), lambda b, i: (b, 0, i, 0))] * 2,
        compiler_params=pltpu.CompilerParams(
            dimension_semantics=("parallel", "parallel"),
            vmem_limit_bytes=vmem1),
        cost_estimate=pl.CostEstimate(
            flops=4 * B * T * W * W,
            transcendentals=B * T,
            bytes_accessed=8 * B * T * W + 4 * W * W),
    )(x, *kv_weights)

    # --- stage B: flash attention over KV tiles + proj + LN2 + MLP + residual - #
    attn_weights = (p["ln1_g"], p["ln1_b"], p["w_q"], p["b_q"],
                    p["w_proj"], p["b_proj"], p["ln2_g"], p["ln2_b"],
                    p["w_fc"], p["b_fc"], p["w_cproj"], p["b_cproj"])
    vmem2 = _vmem_limit(
        2 * 4 * tq * W                    # x tile
        + 2 * 2 * 2 * tk * W              # K / V tiles (head-major bf16, double-buffered)
        + 2 * 4 * tq * W                  # output tile
        + wbuf * 2 * 10 * W * W           # w_q + w_proj + w_fc + w_cproj (bf16)
        + 2 * tq * W + 4 * tq * W         # q scratch (bf16) + acc scratch (f32)
        + 2 * 4 * heads * tq * 128        # m / l scratch (lane-padded)
        + 3 * 4 * heads * tq * tk         # score / exp temporaries
        + 3 * 4 * tq * 4 * W              # MLP hidden temporaries
        + 8 * 4 * tq * W)                 # headroom
    out = pl.pallas_call(
        functools.partial(_attn_mlp_kernel, heads=heads),
        out_shape=jax.ShapeDtypeStruct((B, T, W), x.dtype),
        grid=(B, nq, nk),
        in_specs=[pl.BlockSpec((1, tq, W), lambda b, i, j: (b, i, 0)),
                  pl.BlockSpec((1, heads, tk, C), lambda b, i, j: (b, 0, j, 0)),
                  pl.BlockSpec((1, heads, tk, C), lambda b, i, j: (b, 0, j, 0))]
                 + [_const_spec(t.shape, 3) for t in attn_weights],
        out_specs=pl.BlockSpec((1, tq, W), lambda b, i, j: (b, i, 0)),
        scratch_shapes=[pltpu.VMEM((heads, tq, C), bf16),          # q stash
                        pltpu.VMEM((heads, tq, 1), jnp.float32),   # running max
                        pltpu.VMEM((heads, tq, 1), jnp.float32),   # running sum
                        pltpu.VMEM((heads, tq, C), jnp.float32)],  # unnormalized ctx
        compiler_params=pltpu.CompilerParams(
            dimension_semantics=("parallel", "parallel", "arbitrary"),
            vmem_limit_bytes=vmem2),
        cost_estimate=pl.CostEstimate(
            flops=20 * B * T * W * W + 4 * B * T * T * W,
            transcendentals=B * heads * T * T + 8 * B * T * W,
            bytes_accessed=8 * B * T * W + (T // tq) * 4 * B * T * W + 20 * W * W),
    )(x, k, v, *attn_weights)
    return out


def transformer_forward(x, kernel_params, heads, tq=None, tk=None, tr=None):
    _, T, _ = x.shape
    tq = _pick_tile(T, 256) if tq is None else tq
    tk = _pick_tile(T, 512) if tk is None else tk
    tr = _pick_tile(T, 256) if tr is None else tr
    for p in kernel_params:
        x = _residual_block(x, p, heads, tq, tk, tr)
    return x


# --------------------------------------------------------------------------- #
# parameters
# --------------------------------------------------------------------------- #
def init_transformer_params(key, *, width, layers, init_scale=0.25, dtype=jnp.float32):
    # Matches the PyTorch __init__: init_scale = init_scale*sqrt(1/width),
    # linear weights ~ N(0, std) (stored as (in, out), i.e. weight.T), biases = 0,
    # LayerNorm gamma = 1 / beta = 0.
    std = init_scale * math.sqrt(1.0 / width)
    params = []
    for _ in range(layers):
        key, k1, k2, k3, k4 = jax.random.split(key, 5)
        params.append({
            "ln1_g": jnp.ones((1, width), dtype),
            "ln1_b": jnp.zeros((1, width), dtype),
            "w_qkv": (std * jax.random.normal(k1, (width, 3 * width))).astype(dtype),
            "b_qkv": jnp.zeros((1, 3 * width), dtype),
            "w_proj": (std * jax.random.normal(k2, (width, width))).astype(dtype),
            "b_proj": jnp.zeros((1, width), dtype),
            "ln2_g": jnp.ones((1, width), dtype),
            "ln2_b": jnp.zeros((1, width), dtype),
            "w_fc": (std * jax.random.normal(k3, (width, 4 * width))).astype(dtype),
            "b_fc": jnp.zeros((1, 4 * width), dtype),
            "w_cproj": (std * jax.random.normal(k4, (4 * width, width))).astype(dtype),
            "b_cproj": jnp.zeros((1, width), dtype),
        })
    return params


def prepare_kernel_params(params, heads, compute_dtype=jnp.bfloat16):
    """Host-side prep: split the fused QKV weight into head-split (heads, W, C)
    q/k/v weights (head h -> its own contiguous block, so kernels never lane-slice),
    fold the 1/sqrt(C) attention scale into w_q / b_q, reshape w_proj to
    (heads, C, W), and cast matmul weights to bf16 (LN params / biases stay f32)."""
    kernel_params = []
    for p in params:
        W = p["w_proj"].shape[0]
        assert W % heads == 0
        C = W // heads
        scale = 1.0 / math.sqrt(C)
        w_qkv = p["w_qkv"].reshape(W, heads, 3, C)     # col = h*3C + part*C + c
        b_qkv = p["b_qkv"].reshape(heads, 3, C)

        def hm_w(part):   # (heads, W, C)
            return jnp.transpose(w_qkv[:, :, part, :], (1, 0, 2))

        def hm_b(part):   # (heads, 1, C), f32
            return b_qkv[:, part, :][:, None, :]

        kernel_params.append({
            "ln1_g": p["ln1_g"], "ln1_b": p["ln1_b"],
            "w_q": (hm_w(0) * scale).astype(compute_dtype),
            "b_q": hm_b(0) * scale,
            "w_k": hm_w(1).astype(compute_dtype), "b_k": hm_b(1),
            "w_v": hm_w(2).astype(compute_dtype), "b_v": hm_b(2),
            "w_proj": p["w_proj"].reshape(heads, C, W).astype(compute_dtype),
            "b_proj": p["b_proj"],
            "ln2_g": p["ln2_g"], "ln2_b": p["ln2_b"],
            "w_fc": p["w_fc"].astype(compute_dtype), "b_fc": p["b_fc"],
            "w_cproj": p["w_cproj"].astype(compute_dtype), "b_cproj": p["b_cproj"],
        })
    return kernel_params


# --------------------------------------------------------------------------- #
# pure-JAX references
# --------------------------------------------------------------------------- #
def _ref_block_f32(x, p, heads):
    # Faithful f32 transcription of the PyTorch block.
    B, T, W = x.shape
    C = W // heads
    scale = 1.0 / math.sqrt(math.sqrt(C))
    h = _layer_norm(x, p["ln1_g"], p["ln1_b"])
    qkv = (h @ p["w_qkv"] + p["b_qkv"]).reshape(B, T, heads, 3 * C)
    q, k, v = qkv[..., :C], qkv[..., C:2 * C], qkv[..., 2 * C:]
    w = jnp.einsum("bthc,bshc->bhts", q * scale, k * scale)
    w = jax.nn.softmax(w, axis=-1)
    a = jnp.einsum("bhts,bshc->bthc", w, v).reshape(B, T, W)
    x1 = x + a @ p["w_proj"] + p["b_proj"]
    h2 = _layer_norm(x1, p["ln2_g"], p["ln2_b"])
    f = _gelu_exact(h2 @ p["w_fc"] + p["b_fc"])
    return x1 + f @ p["w_cproj"] + p["b_cproj"]


def _ref_block_mixed(x, kp, heads):
    # Mirrors the kernel's mixed precision (bf16 matmul inputs, f32 accum/stats).
    bf16, f32 = jnp.bfloat16, jnp.float32
    h1 = _layer_norm(x, kp["ln1_g"], kp["ln1_b"]).astype(bf16)
    q = (jnp.einsum("btw,hwc->bhtc", h1, kp["w_q"], preferred_element_type=f32)
         + kp["b_q"][None]).astype(bf16)
    k = (jnp.einsum("btw,hwc->bhtc", h1, kp["w_k"], preferred_element_type=f32)
         + kp["b_k"][None]).astype(bf16)
    v = (jnp.einsum("btw,hwc->bhtc", h1, kp["w_v"], preferred_element_type=f32)
         + kp["b_v"][None]).astype(bf16)
    s = jnp.einsum("bhqc,bhkc->bhqk", q, k, preferred_element_type=f32)
    m = jnp.max(s, axis=-1, keepdims=True)
    p = jnp.exp(s - m)
    l = jnp.sum(p, axis=-1, keepdims=True)
    ctx = jnp.einsum("bhqk,bhkc->bhqc", p.astype(bf16), v,
                     preferred_element_type=f32) / l
    attn = jnp.einsum("bhqc,hcw->bqw", ctx.astype(bf16), kp["w_proj"],
                      preferred_element_type=f32) + kp["b_proj"]
    x1 = x + attn
    h2 = _layer_norm(x1, kp["ln2_g"], kp["ln2_b"]).astype(bf16)
    f = jnp.einsum("btw,wo->bto", h2, kp["w_fc"], preferred_element_type=f32) + kp["b_fc"]
    f = _gelu_exact(f).astype(bf16)
    mlp = jnp.einsum("bto,ow->btw", f, kp["w_cproj"], preferred_element_type=f32) + kp["b_cproj"]
    return x1 + mlp


def _ref_forward_f32(x, params, heads):
    for p in params:
        x = _ref_block_f32(x, p, heads)
    return x


def _ref_forward_mixed(x, kernel_params, heads):
    for kp in kernel_params:
        x = _ref_block_mixed(x, kp, heads)
    return x


# --------------------------------------------------------------------------- #
# main
# --------------------------------------------------------------------------- #
if __name__ == "__main__":
    B, T, W, HEADS, LAYERS = 2, 32, 32, 4, 2
    # Small tiles so the self-test exercises both the query-tile grid axis and
    # the online-softmax KV accumulation path (nq = nk = 2).
    TQ, TK = 16, 16

    key = jax.random.PRNGKey(0)
    kx, kp = jax.random.split(key)
    x = jax.random.normal(kx, (B, T, W), dtype=jnp.float32)

    torch_params = init_transformer_params(kp, width=W, layers=LAYERS)
    kparams = prepare_kernel_params(torch_params, HEADS)

    out = transformer_forward(x, kparams, HEADS, tq=TQ, tk=TK)
    out = jax.block_until_ready(out)
    assert out.shape == (B, T, W)

    # (1) tight check vs a pure-JAX reference mirroring the kernel's mixed precision.
    ref_mixed = jax.block_until_ready(_ref_forward_mixed(x, kparams, HEADS))
    assert jnp.allclose(out, ref_mixed, rtol=2e-3, atol=2e-3), \
        "Pallas output mismatch vs mixed-precision JAX reference"

    # (2) loose check vs the PyTorch-faithful full-f32 reference (bounds bf16 drift).
    ref_f32 = jax.block_until_ready(_ref_forward_f32(x, torch_params, HEADS))
    assert jnp.allclose(out, ref_f32, rtol=3e-2, atol=3e-2), \
        "Pallas output drifted too far from the f32 PyTorch-semantics reference"

    print("KERNEL_OK")
</pallas_src>

<mosaic_0001>
module attributes {stable_mosaic.version = 11 : i64} {
  func.func @_probe_kernel(%arg0: i32, %arg1: memref<8x128xf32, #tpu.memory_space<vmem>>, %arg2: memref<8x128xf32, #tpu.memory_space<vmem>>) attributes {dimension_semantics = [#tpu.dimension_semantics<arbitrary>], iteration_bounds = array<i64: 1>, scalar_prefetch = 0 : i64, scratch_operands = 0 : i64, tpu.core_type = #tpu.core_type<tc>, window_params = [{pipeline_mode = #tpu.pipeline_mode<synchronous>, transform_indices = @transform_0, window_bounds = array<i64: 8, 128>}, {pipeline_mode = #tpu.pipeline_mode<synchronous>, transform_indices = @transform_1, window_bounds = array<i64: 8, 128>}]} {
    %c0 = arith.constant 0 : index
    %c0_0 = arith.constant 0 : index
    %0 = vector.load %arg1[%c0, %c0_0] : memref<8x128xf32, #tpu.memory_space<vmem>>, vector<8x128xf32>
    %cst = arith.constant 1.000000e+00 : f32
    %1 = vector.broadcast %cst : f32 to vector<8x128xf32>
    %2 = arith.addf %0, %1 : vector<8x128xf32>
    %c0_1 = arith.constant 0 : index
    %c0_2 = arith.constant 0 : index
    %3 = vector.load %arg2[%c0_1, %c0_2] : memref<8x128xf32, #tpu.memory_space<vmem>>, vector<8x128xf32>
    tpu.vector_store %arg2[%c0_1, %c0_2], %2 {strides = array<i32>} : memref<8x128xf32, #tpu.memory_space<vmem>>, vector<8x128xf32>,
    return
  }
  func.func @transform_0(%arg0: i32) -> (i32, i32) {
    %c0_i32 = arith.constant 0 : i32
    %c0_i32_0 = arith.constant 0 : i32
    %c0_i32_1 = arith.constant 0 : i32
    return %c0_i32, %c0_i32_0 : i32, i32
  }
  func.func @transform_1(%arg0: i32) -> (i32, i32) {
    %c0_i32 = arith.constant 0 : i32
    %c0_i32_0 = arith.constant 0 : i32
    %c0_i32_1 = arith.constant 0 : i32
    return %c0_i32, %c0_i32_0 : i32, i32
  }
}

module attributes {stable_mosaic.version = 11 : i64} {
  func.func @_kv_kernel(%arg0: i32, %arg1: i32, %arg2: memref<1x32x32xf32, #tpu.memory_space<vmem>>, %arg3: memref<1x32xf32, #tpu.memory_space<vmem>>, %arg4: memref<1x32xf32, #tpu.memory_space<vmem>>, %arg5: memref<4x32x8xbf16, #tpu.memory_space<vmem>>, %arg6: memref<4x32x8xbf16, #tpu.memory_space<vmem>>, %arg7: memref<4x1x8xf32, #tpu.memory_space<vmem>>, %arg8: memref<4x1x8xf32, #tpu.memory_space<vmem>>, %arg9: memref<1x4x32x8xbf16, #tpu.memory_space<vmem>>, %arg10: memref<1x4x32x8xbf16, #tpu.memory_space<vmem>>) attributes {dimension_semantics = [#tpu.dimension_semantics<parallel>, #tpu.dimension_semantics<parallel>], iteration_bounds = array<i64: 2, 1>, scalar_prefetch = 0 : i64, scratch_operands = 0 : i64, tpu.core_type = #tpu.core_type<tc>, window_params = [{transform_indices = @transform_0, window_bounds = array<i64: 1, 32, 32>}, {pipeline_mode = #tpu.pipeline_mode<synchronous>, transform_indices = @transform_1, window_bounds = array<i64: 1, 32>}, {pipeline_mode = #tpu.pipeline_mode<synchronous>, transform_indices = @transform_2, window_bounds = array<i64: 1, 32>}, {pipeline_mode = #tpu.pipeline_mode<synchronous>, transform_indices = @transform_3, window_bounds = array<i64: 4, 32, 8>}, {pipeline_mode = #tpu.pipeline_mode<synchronous>, transform_indices = @transform_4, window_bounds = array<i64: 4, 32, 8>}, {pipeline_mode = #tpu.pipeline_mode<synchronous>, transform_indices = @transform_5, window_bounds = array<i64: 4, 1, 8>}, {pipeline_mode = #tpu.pipeline_mode<synchronous>, transform_indices = @transform_6, window_bounds = array<i64: 4, 1, 8>}, {transform_indices = @transform_7, window_bounds = array<i64: 1, 4, 32, 8>}, {transform_indices = @transform_8, window_bounds = array<i64: 1, 4, 32, 8>}]} {
    %c0 = arith.constant 0 : index
    %c0_0 = arith.constant 0 : index
    %c0_1 = arith.constant 0 : index
    %0 = vector.load %arg2[%c0, %c0_0, %c0_1] : memref<1x32x32xf32, #tpu.memory_space<vmem>>, vector<1x32x32xf32>
    %1 = vector.shape_cast %0 : vector<1x32x32xf32> to vector<32x32xf32>
    %c0_2 = arith.constant 0 : index
    %c0_3 = arith.constant 0 : index
    %2 = vector.load %arg3[%c0_2, %c0_3] : memref<1x32xf32, #tpu.memory_space<vmem>>, vector<1x32xf32>
    %c0_4 = arith.constant 0 : index
    %c0_5 = arith.constant 0 : index
    %3 = vector.load %arg4[%c0_4, %c0_5] : memref<1x32xf32, #tpu.memory_space<vmem>>, vector<1x32xf32>
    %cst = arith.constant dense<0.000000e+00> : vector<32xf32>
    %4 = vector.multi_reduction <add>, %1, %cst [1] : vector<32x32xf32> to vector<32xf32>
    %5 = vector.shape_cast %4 : vector<32xf32> to vector<32x1xf32>
    %cst_6 = arith.constant 3.200000e+01 : f32
    %6 = vector.broadcast %cst_6 : f32 to vector<32x1xf32>
    %7 = arith.divf %5, %6 : vector<32x1xf32>
    %8 = vector.broadcast %7 : vector<32x1xf32> to vector<32x32xf32>
    %9 = arith.subf %1, %8 : vector<32x32xf32>
    %10 = arith.mulf %9, %9 : vector<32x32xf32>
    %cst_7 = arith.constant dense<0.000000e+00> : vector<32xf32>
    %11 = vector.multi_reduction <add>, %10, %cst_7 [1] : vector<32x32xf32> to vector<32xf32>
    %12 = vector.shape_cast %11 : vector<32xf32> to vector<32x1xf32>
    %cst_8 = arith.constant 3.200000e+01 : f32
    %13 = vector.broadcast %cst_8 : f32 to vector<32x1xf32>
    %14 = arith.divf %12, %13 : vector<32x1xf32>
    %cst_9 = arith.constant 9.99999974E-6 : f32
    %15 = vector.broadcast %cst_9 : f32 to vector<32x1xf32>
    %16 = arith.addf %14, %15 : vector<32x1xf32>
    %17 = math.rsqrt %16 : vector<32x1xf32>
    %18 = vector.broadcast %17 : vector<32x1xf32> to vector<32x32xf32>
    %19 = arith.mulf %9, %18 : vector<32x32xf32>
    %20 = vector.broadcast %2 : vector<1x32xf32> to vector<32x32xf32>
    %21 = arith.mulf %19, %20 : vector<32x32xf32>
    %22 = vector.broadcast %3 : vector<1x32xf32> to vector<32x32xf32>
    %23 = arith.addf %21, %22 : vector<32x32xf32>
    %24 = arith.truncf %23 : vector<32x32xf32> to vector<32x32xbf16>
    %c0_10 = arith.constant 0 : index
    %c0_11 = arith.constant 0 : index
    %c0_12 = arith.constant 0 : index
    %25 = vector.load %arg5[%c0_10, %c0_11, %c0_12] : memref<4x32x8xbf16, #tpu.memory_space<vmem>>, vector<1x32x8xbf16>
    %26 = vector.shape_cast %25 : vector<1x32x8xbf16> to vector<32x8xbf16>
    %cst_13 = arith.constant dense<0.000000e+00> : vector<32x8xf32>
    %27 = tpu.matmul %24, %26, %cst_13 {dimension_numbers = #tpu.dot_dimension_numbers<[1], [0], [0], [1], [0, 0, 1, 1], [], []>} : vector<32x32xbf16>, vector<32x8xbf16>, vector<32x8xf32> -> vector<32x8xf32>
    %c0_14 = arith.constant 0 : index
    %c0_15 = arith.constant 0 : index
    %c0_16 = arith.constant 0 : index
    %28 = vector.load %arg7[%c0_14, %c0_15, %c0_16] : memref<4x1x8xf32, #tpu.memory_space<vmem>>, vector<1x1x8xf32>
    %29 = vector.shape_cast %28 : vector<1x1x8xf32> to vector<1x8xf32>
    %30 = vector.broadcast %29 : vector<1x8xf32> to vector<32x8xf32>
    %31 = arith.addf %27, %30 : vector<32x8xf32>
    %32 = arith.truncf %31 : vector<32x8xf32> to vector<32x8xbf16>
    %c0_17 = arith.constant 0 : index
    %c0_18 = arith.constant 0 : index
    %c0_19 = arith.constant 0 : index
    %c0_20 = arith.constant 0 : index
    %33 = vector.load %arg9[%c0_17, %c0_18, %c0_19, %c0_20] : memref<1x4x32x8xbf16, #tpu.memory_space<vmem>>, vector<1x1x32x8xbf16>
    %34 = vector.shape_cast %33 : vector<1x1x32x8xbf16> to vector<32x8xbf16>
    %35 = vector.shape_cast %32 : vector<32x8xbf16> to vector<1x1x32x8xbf16>
    tpu.vector_store %arg9[%c0_17, %c0_18, %c0_19, %c0_20], %35 {strides = array<i32>} : memref<1x4x32x8xbf16, #tpu.memory_space<vmem>>, vector<1x1x32x8xbf16>,
    %c0_21 = arith.constant 0 : index
    %c0_22 = arith.constant 0 : index
    %c0_23 = arith.constant 0 : index
    %36 = vector.load %arg6[%c0_21, %c0_22, %c0_23] : memref<4x32x8xbf16, #tpu.memory_space<vmem>>, vector<1x32x8xbf16>
    %37 = vector.shape_cast %36 : vector<1x32x8xbf16> to vector<32x8xbf16>
    %cst_24 = arith.constant dense<0.000000e+00> : vector<32x8xf32>
    %38 = tpu.matmul %24, %37, %cst_24 {dimension_numbers = #tpu.dot_dimension_numbers<[1], [0], [0], [1], [0, 0, 1, 1], [], []>} : vector<32x32xbf16>, vector<32x8xbf16>, vector<32x8xf32> -> vector<32x8xf32>
    %c0_25 = arith.constant 0 : index
    %c0_26 = arith.constant 0 : index
    %c0_27 = arith.constant 0 : index
    %39 = vector.load %arg8[%c0_25, %c0_26, %c0_27] : memref<4x1x8xf32, #tpu.memory_space<vmem>>, vector<1x1x8xf32>
    %40 = vector.shape_cast %39 : vector<1x1x8xf32> to vector<1x8xf32>
    %41 = vector.broadcast %40 : vector<1x8xf32> to vector<32x8xf32>
    %42 = arith.addf %38, %41 : vector<32x8xf32>
    %43 = arith.truncf %42 : vector<32x8xf32> to vector<32x8xbf16>
    %c0_28 = arith.constant 0 : index
    %c0_29 = arith.constant 0 : index
    %c0_30 = arith.constant 0 : index
    %c0_31 = arith.constant 0 : index
    %44 = vector.load %arg10[%c0_28, %c0_29, %c0_30, %c0_31] : memref<1x4x32x8xbf16, #tpu.memory_space<vmem>>, vector<1x1x32x8xbf16>
    %45 = vector.shape_cast %44 : vector<1x1x32x8xbf16> to vector<32x8xbf16>
    %46 = vector.shape_cast %43 : vector<32x8xbf16> to vector<1x1x32x8xbf16>
    tpu.vector_store %arg10[%c0_28, %c0_29, %c0_30, %c0_31], %46 {strides = array<i32>} : memref<1x4x32x8xbf16, #tpu.memory_space<vmem>>, vector<1x1x32x8xbf16>,
    %c1 = arith.constant 1 : index
    %c0_32 = arith.constant 0 : index
    %c0_33 = arith.constant 0 : index
    %47 = vector.load %arg5[%c1, %c0_32, %c0_33] : memref<4x32x8xbf16, #tpu.memory_space<vmem>>, vector<1x32x8xbf16>
    %48 = vector.shape_cast %47 : vector<1x32x8xbf16> to vector<32x8xbf16>
    %cst_34 = arith.constant dense<0.000000e+00> : vector<32x8xf32>
    %49 = tpu.matmul %24, %48, %cst_34 {dimension_numbers = #tpu.dot_dimension_numbers<[1], [0], [0], [1], [0, 0, 1, 1], [], []>} : vector<32x32xbf16>, vector<32x8xbf16>, vector<32x8xf32> -> vector<32x8xf32>
    %c1_35 = arith.constant 1 : index
    %c0_36 = arith.constant 0 : index
    %c0_37 = arith.constant 0 : index
    %50 = vector.load %arg7[%c1_35, %c0_36, %c0_37] : memref<4x1x8xf32, #tpu.memory_space<vmem>>, vector<1x1x8xf32>
    %51 = vector.shape_cast %50 : vector<1x1x8xf32> to vector<1x8xf32>
    %52 = vector.broadcast %51 : vector<1x8xf32> to vector<32x8xf32>
    %53 = arith.addf %49, %52 : vector<32x8xf32>
    %54 = arith.truncf %53 : vector<32x8xf32> to vector<32x8xbf16>
    %c0_38 = arith.constant 0 : index
    %c1_39 = arith.constant 1 : index
    %c0_40 = arith.constant 0 : index
    %c0_41 = arith.constant 0 : index
    %55 = vector.load %arg9[%c0_38, %c1_39, %c0_40, %c0_41] : memref<1x4x32x8xbf16, #tpu.memory_space<vmem>>, vector<1x1x32x8xbf16>
    %56 = vector.shape_cast %55 : vector<1x1x32x8xbf16> to vector<32x8xbf16>
    %57 = vector.shape_cast %54 : vector<32x8xbf16> to vector<1x1x32x8xbf16>
    tpu.vector_store %arg9[%c0_38, %c1_39, %c0_40, %c0_41], %57 {strides = array<i32>} : memref<1x4x32x8xbf16, #tpu.memory_space<vmem>>, vector<1x1x32x8xbf16>,
    %c1_42 = arith.constant 1 : index
    %c0_43 = arith.constant 0 : index
    %c0_44 = arith.constant 0 : index
    %58 = vector.load %arg6[%c1_42, %c0_43, %c0_44] : memref<4x32x8xbf16, #tpu.memory_space<vmem>>, vector<1x32x8xbf16>
    %59 = vector.shape_cast %58 : vector<1x32x8xbf16> to vector<32x8xbf16>
    %cst_45 = arith.constant dense<0.000000e+00> : vector<32x8xf32>
    %60 = tpu.matmul %24, %59, %cst_45 {dimension_numbers = #tpu.dot_dimension_numbers<[1], [0], [0], [1], [0, 0, 1, 1], [], []>} : vector<32x32xbf16>, vector<32x8xbf16>, vector<32x8xf32> -> vector<32x8xf32>
    %c1_46 = arith.constant 1 : index
    %c0_47 = arith.constant 0 : index
    %c0_48 = arith.constant 0 : index
    %61 = vector.load %arg8[%c1_46, %c0_47, %c0_48] : memref<4x1x8xf32, #tpu.memory_space<vmem>>, vector<1x1x8xf32>
    %62 = vector.shape_cast %61 : vector<1x1x8xf32> to vector<1x8xf32>
    %63 = vector.broadcast %62 : vector<1x8xf32> to vector<32x8xf32>
    %64 = arith.addf %60, %63 : vector<32x8xf32>
    %65 = arith.truncf %64 : vector<32x8xf32> to vector<32x8xbf16>
    %c0_49 = arith.constant 0 : index
    %c1_50 = arith.constant 1 : index
    %c0_51 = arith.constant 0 : index
    %c0_52 = arith.constant 0 : index
    %66 = vector.load %arg10[%c0_49, %c1_50, %c0_51, %c0_52] : memref<1x4x32x8xbf16, #tpu.memory_space<vmem>>, vector<1x1x32x8xbf16>
    %67 = vector.shape_cast %66 : vector<1x1x32x8xbf16> to vector<32x8xbf16>
    %68 = vector.shape_cast %65 : vector<32x8xbf16> to vector<1x1x32x8xbf16>
    tpu.vector_store %arg10[%c0_49, %c1_50, %c0_51, %c0_52], %68 {strides = array<i32>} : memref<1x4x32x8xbf16, #tpu.memory_space<vmem>>, vector<1x1x32x8xbf16>,
    %c2 = arith.constant 2 : index
    %c0_53 = arith.constant 0 : index
    %c0_54 = arith.constant 0 : index
    %69 = vector.load %arg5[%c2, %c0_53, %c0_54] : memref<4x32x8xbf16, #tpu.memory_space<vmem>>, vector<1x32x8xbf16>
    %70 = vector.shape_cast %69 : vector<1x32x8xbf16> to vector<32x8xbf16>
    %cst_55 = arith.constant dense<0.000000e+00> : vector<32x8xf32>
    %71 = tpu.matmul %24, %70, %cst_55 {dimension_numbers = #tpu.dot_dimension_numbers<[1], [0], [0], [1], [0, 0, 1, 1], [], []>} : vector<32x32xbf16>, vector<32x8xbf16>, vector<32x8xf32> -> vector<32x8xf32>
    %c2_56 = arith.constant 2 : index
    %c0_57 = arith.constant 0 : index
    %c0_58 = arith.constant 0 : index
    %72 = vector.load %arg7[%c2_56, %c0_57, %c0_58] : memref<4x1x8xf32, #tpu.memory_space<vmem>>, vector<1x1x8xf32>
    %73 = vector.shape_cast %72 : vector<1x1x8xf32> to vector<1x8xf32>
    %74 = vector.broadcast %73 : vector<1x8xf32> to vector<32x8xf32>
    %75 = arith.addf %71, %74 : vector<32x8xf32>
    %76 = arith.truncf %75 : vector<32x8xf32> to vector<32x8xbf16>
    %c0_59 = arith.constant 0 : index
    %c2_60 = arith.constant 2 : index
    %c0_61 = arith.constant 0 : index
    %c0_62 = arith.constant 0 : index
    %77 = vector.load %arg9[%c0_59, %c2_60, %c0_61, %c0_62] : memref<1x4x32x8xbf16, #tpu.memory_space<vmem>>, vector<1x1x32x8xbf16>
    %78 = vector.shape_cast %77 : vector<1x1x32x8xbf16> to vector<32x8xbf16>
    %79 = vector.shape_cast %76 : vector<32x8xbf16> to vector<1x1x32x8xbf16>
    tpu.vector_store %arg9[%c0_59, %c2_60, %c0_61, %c0_62], %79 {strides = array<i32>} : memref<1x4x32x8xbf16, #tpu.memory_space<vmem>>, vector<1x1x32x8xbf16>,
    %c2_63 = arith.constant 2 : index
    %c0_64 = arith.constant 0 : index
    %c0_65 = arith.constant 0 : index
    %80 = vector.load %arg6[%c2_63, %c0_64, %c0_65] : memref<4x32x8xbf16, #tpu.memory_space<vmem>>, vector<1x32x8xbf16>
    %81 = vector.shape_cast %80 : vector<1x32x8xbf16> to vector<32x8xbf16>
    %cst_66 = arith.constant dense<0.000000e+00> : vector<32x8xf32>
    %82 = tpu.matmul %24, %81, %cst_66 {dimension_numbers = #tpu.dot_dimension_numbers<[1], [0], [0], [1], [0, 0, 1, 1], [], []>} : vector<32x32xbf16>, vector<32x8xbf16>, vector<32x8xf32> -> vector<32x8xf32>
    %c2_67 = arith.constant 2 : index
    %c0_68 = arith.constant 0 : index
    %c0_69 = arith.constant 0 : index
    %83 = vector.load %arg8[%c2_67, %c0_68, %c0_69] : memref<4x1x8xf32, #tpu.memory_space<vmem>>, vector<1x1x8xf32>
    %84 = vector.shape_cast %83 : vector<1x1x8xf32> to vector<1x8xf32>
    %85 = vector.broadcast %84 : vector<1x8xf32> to vector<32x8xf32>
    %86 = arith.addf %82, %85 : vector<32x8xf32>
    %87 = arith.truncf %86 : vector<32x8xf32> to vector<32x8xbf16>
    %c0_70 = arith.constant 0 : index
    %c2_71 = arith.constant 2 : index
    %c0_72 = arith.constant 0 : index
    %c0_73 = arith.constant 0 : index
    %88 = vector.load %arg10[%c0_70, %c2_71, %c0_72, %c0_73] : memref<1x4x32x8xbf16, #tpu.memory_space<vmem>>, vector<1x1x32x8xbf16>
    %89 = vector.shape_cast %88 : vector<1x1x32x8xbf16> to vector<32x8xbf16>
    %90 = vector.shape_cast %87 : vector<32x8xbf16> to vector<1x1x32x8xbf16>
    tpu.vector_store %arg10[%c0_70, %c2_71, %c0_72, %c0_73], %90 {strides = array<i32>} : memref<1x4x32x8xbf16, #tpu.memory_space<vmem>>, vector<1x1x32x8xbf16>,
    %c3 = arith.constant 3 : index
    %c0_74 = arith.constant 0 : index
    %c0_75 = arith.constant 0 : index
    %91 = vector.load %arg5[%c3, %c0_74, %c0_75] : memref<4x32x8xbf16, #tpu.memory_space<vmem>>, vector<1x32x8xbf16>
    %92 = vector.shape_cast %91 : vector<1x32x8xbf16> to vector<32x8xbf16>
    %cst_76 = arith.constant dense<0.000000e+00> : vector<32x8xf32>
    %93 = tpu.matmul %24, %92, %cst_76 {dimension_numbers = #tpu.dot_dimension_numbers<[1], [0], [0], [1], [0, 0, 1, 1], [], []>} : vector<32x32xbf16>, vector<32x8xbf16>, vector<32x8xf32> -> vector<32x8xf32>
    %c3_77 = arith.constant 3 : index
    %c0_78 = arith.constant 0 : index
    %c0_79 = arith.constant 0 : index
    %94 = vector.load %arg7[%c3_77, %c0_78, %c0_79] : memref<4x1x8xf32, #tpu.memory_space<vmem>>, vector<1x1x8xf32>
    %95 = vector.shape_cast %94 : vector<1x1x8xf32> to vector<1x8xf32>
    %96 = vector.broadcast %95 : vector<1x8xf32> to vector<32x8xf32>
    %97 = arith.addf %93, %96 : vector<32x8xf32>
    %98 = arith.truncf %97 : vector<32x8xf32> to vector<32x8xbf16>
    %c0_80 = arith.constant 0 : index
    %c3_81 = arith.constant 3 : index
    %c0_82 = arith.constant 0 : index
    %c0_83 = arith.constant 0 : index
    %99 = vector.load %arg9[%c0_80, %c3_81, %c0_82, %c0_83] : memref<1x4x32x8xbf16, #tpu.memory_space<vmem>>, vector<1x1x32x8xbf16>
    %100 = vector.shape_cast %99 : vector<1x1x32x8xbf16> to vector<32x8xbf16>
    %101 = vector.shape_cast %98 : vector<32x8xbf16> to vector<1x1x32x8xbf16>
    tpu.vector_store %arg9[%c0_80, %c3_81, %c0_82, %c0_83], %101 {strides = array<i32>} : memref<1x4x32x8xbf16, #tpu.memory_space<vmem>>, vector<1x1x32x8xbf16>,
    %c3_84 = arith.constant 3 : index
    %c0_85 = arith.constant 0 : index
    %c0_86 = arith.constant 0 : index
    %102 = vector.load %arg6[%c3_84, %c0_85, %c0_86] : memref<4x32x8xbf16, #tpu.memory_space<vmem>>, vector<1x32x8xbf16>
    %103 = vector.shape_cast %102 : vector<1x32x8xbf16> to vector<32x8xbf16>
    %cst_87 = arith.constant dense<0.000000e+00> : vector<32x8xf32>
    %104 = tpu.matmul %24, %103, %cst_87 {dimension_numbers = #tpu.dot_dimension_numbers<[1], [0], [0], [1], [0, 0, 1, 1], [], []>} : vector<32x32xbf16>, vector<32x8xbf16>, vector<32x8xf32> -> vector<32x8xf32>
    %c3_88 = arith.constant 3 : index
    %c0_89 = arith.constant 0 : index
    %c0_90 = arith.constant 0 : index
    %105 = vector.load %arg8[%c3_88, %c0_89, %c0_90] : memref<4x1x8xf32, #tpu.memory_space<vmem>>, vector<1x1x8xf32>
    %106 = vector.shape_cast %105 : vector<1x1x8xf32> to vector<1x8xf32>
    %107 = vector.broadcast %106 : vector<1x8xf32> to vector<32x8xf32>
    %108 = arith.addf %104, %107 : vector<32x8xf32>
    %109 = arith.truncf %108 : vector<32x8xf32> to vector<32x8xbf16>
    %c0_91 = arith.constant 0 : index
    %c3_92 = arith.constant 3 : index
    %c0_93 = arith.constant 0 : index
    %c0_94 = arith.constant 0 : index
    %110 = vector.load %arg10[%c0_91, %c3_92, %c0_93, %c0_94] : memref<1x4x32x8xbf16, #tpu.memory_space<vmem>>, vector<1x1x32x8xbf16>
    %111 = vector.shape_cast %110 : vector<1x1x32x8xbf16> to vector<32x8xbf16>
    %112 = vector.shape_cast %109 : vector<32x8xbf16> to vector<1x1x32x8xbf16>
    tpu.vector_store %arg10[%c0_91, %c3_92, %c0_93, %c0_94], %112 {strides = array<i32>} : memref<1x4x32x8xbf16, #tpu.memory_space<vmem>>, vector<1x1x32x8xbf16>,
    return
  }
  func.func @transform_0(%arg0: i32, %arg1: i32) -> (i32, i32, i32) {
    %c0_i32 = arith.constant 0 : i32
    %c0_i32_0 = arith.constant 0 : i32
    return %arg0, %arg1, %c0_i32 : i32, i32, i32
  }
  func.func @transform_1(%arg0: i32, %arg1: i32) -> (i32, i32) {
    %c0_i32 = arith.constant 0 : i32
    %c0_i32_0 = arith.constant 0 : i32
    %c0_i32_1 = arith.constant 0 : i32
    return %c0_i32, %c0_i32_0 : i32, i32
  }
  func.func @transform_2(%arg0: i32, %arg1: i32) -> (i32, i32) {
    %c0_i32 = arith.constant 0 : i32
    %c0_i32_0 = arith.constant 0 : i32
    %c0_i32_1 = arith.constant 0 : i32
    return %c0_i32, %c0_i32_0 : i32, i32
  }
  func.func @transform_3(%arg0: i32, %arg1: i32) -> (i32, i32, i32) {
    %c0_i32 = arith.constant 0 : i32
    %c0_i32_0 = arith.constant 0 : i32
    %c0_i32_1 = arith.constant 0 : i32
    %c0_i32_2 = arith.constant 0 : i32
    return %c0_i32, %c0_i32_0, %c0_i32_1 : i32, i32, i32
  }
  func.func @transform_4(%arg0: i32, %arg1: i32) -> (i32, i32, i32) {
    %c0_i32 = arith.constant 0 : i32
    %c0_i32_0 = arith.constant 0 : i32
    %c0_i32_1 = arith.constant 0 : i32
    %c0_i32_2 = arith.constant 0 : i32
    return %c0_i32, %c0_i32_0, %c0_i32_1 : i32, i32, i32
  }
  func.func @transform_5(%arg0: i32, %arg1: i32) -> (i32, i32, i32) {
    %c0_i32 = arith.constant 0 : i32
    %c0_i32_0 = arith.constant 0 : i32
    %c0_i32_1 = arith.constant 0 : i32
    %c0_i32_2 = arith.constant 0 : i32
    return %c0_i32, %c0_i32_0, %c0_i32_1 : i32, i32, i32
  }
  func.func @transform_6(%arg0: i32, %arg1: i32) -> (i32, i32, i32) {
    %c0_i32 = arith.constant 0 : i32
    %c0_i32_0 = arith.constant 0 : i32
    %c0_i32_1 = arith.constant 0 : i32
    %c0_i32_2 = arith.constant 0 : i32
    return %c0_i32, %c0_i32_0, %c0_i32_1 : i32, i32, i32
  }
  func.func @transform_7(%arg0: i32, %arg1: i32) -> (i32, i32, i32, i32) {
    %c0_i32 = arith.constant 0 : i32
    %c0_i32_0 = arith.constant 0 : i32
    %c0_i32_1 = arith.constant 0 : i32
    return %arg0, %c0_i32, %arg1, %c0_i32_0 : i32, i32, i32, i32
  }
  func.func @transform_8(%arg0: i32, %arg1: i32) -> (i32, i32, i32, i32) {
    %c0_i32 = arith.constant 0 : i32
    %c0_i32_0 = arith.constant 0 : i32
    %c0_i32_1 = arith.constant 0 : i32
    return %arg0, %c0_i32, %arg1, %c0_i32_0 : i32, i32, i32, i32
  }
}

</mosaic_0001>

<llo_original>
// kernel: tpu_custom_call.1
$region0: #{tpu_custom_call.1}
  #allocation0 [shape = 'u32[]', space=smem, size = 0x4, offset = 0x4, fixed_abs, tag = 'smem constant byte address 0x4 - core index']
  #allocation1 [shape = 'u32[72,128]{1,0:T(1,128)}', space=vmem, size = 0x9000, scoped, tag = 'internal scratch']
  %s0 = inlined_call_operand.hbm [shape: f32[8,128], index: 0, kind: input, shape index: {}]
  %s1 = inlined_call_operand.hbm [shape: f32[8,128], index: 1, kind: output, shape index: {}]
  %s2 = sld [smem:[#allocation0]]
  $region18: #{tpu_custom_call.1} parent=0
    _
  %s4 = ssub.s32 1, %s2
  %s5 = scalar_select 0, %s4, %s2
  $region1: #{tpu_custom_call.1} parent=0
    #allocation2 [shape = 'u8[4096]{0}', space=vmem, size = 0x1000, scoped, tag = 'input window, operand 0, single buffered']
    #allocation3 [shape = 's32[1]{0}', space=sflag, size = 0x4, scoped, tag = 'scoped memory for tpu_custom_call.1']
    #allocation4 [shape = 's32[1]{0}', space=sflag, size = 0x4, scoped, tag = 'scoped memory for tpu_custom_call.1']
    #allocation5 [shape = 'u8[4096]{0}', space=vmem, size = 0x1000, scoped, tag = 'output window, operand 0, single buffered']
    %6 = vsyncpa [#allocation3], 0
    %7 = vsyncpa [#allocation4], 0
    // Predicated region
    $region2: #{tpu_custom_call.1} parent=1 // pred_check
      _
    $region3: #{tpu_custom_call.1} parent=1 // pred_check_branch
      %9 = sbr.rel (0) target = $region5
    $region4: #{tpu_custom_call.1} parent=1 // pred_region
      %11 = vsyncadd [#allocation3], 0
      %s13 = sshll.u32 %s0, 4
      %s14 = int_to_ptr.hbm [resolvable:$true] %s13
      %s15 = sshll.u32 [#allocation2], 4
      %s16 = int_to_ptr.vmem [resolvable:$true] %s15
      %18 = dma.hbm_to_vmem [thread:$0]  %s14, 128, %s16, [#allocation3]
    $region5: #{tpu_custom_call.1} parent=1 // pred_fallthru
      _
    // Predicated region
    $region6: #{tpu_custom_call.1} parent=1 // pred_check
      _
    $region7: #{tpu_custom_call.1} parent=1 // pred_check_branch
      %20 = sbr.rel (0) target = $region9
    $region8: #{tpu_custom_call.1} parent=1 // pred_region
      %22 = dma.done [#allocation3], 128
    $region9: #{tpu_custom_call.1} parent=1 // pred_fallthru
      _
    %v23 = vld [vmem:[#allocation2] sm:$0xff]
    %v24 = vadd.f32 %v23, 1.0
    %25 = vst [vmem:[#allocation5] sm:$0xff] %v24
    // Predicated region
    $region10: #{tpu_custom_call.1} parent=1 // pred_check
      _
    $region11: #{tpu_custom_call.1} parent=1 // pred_check_branch
      %27 = sbr.rel (0) target = $region13
    $region12: #{tpu_custom_call.1} parent=1 // pred_region
      %29 = vsyncadd [#allocation4], 0
      %s31 = sshll.u32 [#allocation5], 4
      %s32 = int_to_ptr.vmem [resolvable:$true] %s31
      %s33 = sshll.u32 %s1, 4
      %s34 = int_to_ptr.hbm [resolvable:$true] %s33
      %36 = dma.vmem_to_hbm [thread:$0]  %s32, 128, %s34, [#allocation4]
    $region13: #{tpu_custom_call.1} parent=1 // pred_fallthru
      _
    // Predicated region
    $region14: #{tpu_custom_call.1} parent=1 // pred_check
      _
    $region15: #{tpu_custom_call.1} parent=1 // pred_check_branch
      %38 = sbr.rel (0) target = $region17
    $region16: #{tpu_custom_call.1} parent=1 // pred_region
      %40 = dma.done [#allocation4], 128
    $region17: #{tpu_custom_call.1} parent=1 // pred_fallthru
      _
    %41 = vsyncpa [#allocation3], 1
    %42 = vsyncpa [#allocation4], 1

// kernel: tpu_custom_call.1
$region0: #{tpu_custom_call.1}
  #allocation0 [shape = 'u32[]', space=smem, size = 0x4, offset = 0x4, fixed_abs, tag = 'smem constant byte address 0x4 - core index']
  #allocation1 [shape = 'u32[72,128]{1,0:T(1,128)}', space=vmem, size = 0x9000, scoped, tag = 'internal scratch']
  %s0 = inlined_call_operand.vmem [shape: f32[2,32,32], index: 0, kind: input, shape index: {}]
  %s1 = inlined_call_operand.vmem [shape: f32[1,32], index: 1, kind: input, shape index: {}]
  %s2 = inlined_call_operand.vmem [shape: f32[1,32], index: 2, kind: input, shape index: {}]
  %s3 = inlined_call_operand.vmem [shape: bf16[4,32,8], index: 3, kind: input, shape index: {}]
  %s4 = inlined_call_operand.vmem [shape: bf16[4,32,8], index: 4, kind: input, shape index: {}]
  %s5 = inlined_call_operand.vmem [shape: f32[4,1,8], index: 5, kind: input, shape index: {}]
  %s6 = inlined_call_operand.vmem [shape: f32[4,1,8], index: 6, kind: input, shape index: {}]
  %s7 = inlined_call_operand.vmem [shape: bf16[2,4,32,8], index: 7, kind: output, shape index: {0}]
  %s8 = inlined_call_operand.vmem [shape: bf16[2,4,32,8], index: 8, kind: output, shape index: {1}]
  %9 = xla_tuple %s7, %s8
  %s10 = sld [smem:[#allocation0]]
  $region69: #{tpu_custom_call.1} parent=0
    _
  %s12 = ssub.s32 1, %s10
  %s13 = scalar_select 0, %s12, %s10
  loop: start=0, step=1, limit=4
  $region2: #{tpu_custom_call.1} parent=0 // loop_pre_header
    _
  $region3: #{tpu_custom_call.1} parent=0 // loop_header
    %s15 = sphi 0, %s19
    %p16 = scmp.ge.s32.totalorder %s15, 4
    %s22 = sphi 0, %s34
    %s23 = sphi 0, %s30
    %s24 = sphi 0, %s22
    %s25 = sphi 0, %s23
    %s26 = sphi 0, %s24
    %s27 = sphi 0, %s25
    %s39 = sphi 0, %s41
    %s42 = sphi 0, %s39
    %s43 = sphi 0, %s42
    %s59 = sphi 0, %s43
    %s63 = sphi 0, %s63
    %s65 = sphi 0, %s63
    %s66 = sphi 0, %s65
    %s80 = sphi 0, %s66
    %s84 = sphi 0, %s84
    %s86 = sphi 0, %s84
    %s87 = sphi 0, %s86
    %s101 = sphi 0, %s87
    %s105 = sphi 0, %s105
    %s107 = sphi 0, %s105
    %s108 = sphi 0, %s107
    %s122 = sphi 0, %s108
    %s126 = sphi 0, %s126
    %s128 = sphi 0, %s126
    %s129 = sphi 0, %s128
    %s143 = sphi 0, %s129
    %s147 = sphi 0, %s147
    %s149 = sphi 0, %s147
    %s150 = sphi 0, %s149
    %s164 = sphi 0, %s150
    %s168 = sphi 0, %s168
    %s170 = sphi 0, %s168
    %s171 = sphi 0, %s170
    %s185 = sphi 0, %s171
    %s193 = sphi 0, %s195
    %s196 = sphi 0, %s193
    %s197 = sphi 0, %s196
    %s213 = sphi 0, %s197
    %s221 = sphi 0, %s223
    %s224 = sphi 0, %s221
    %s225 = sphi 0, %s224
    %s241 = sphi 0, %s225
  $region4: #{tpu_custom_call.1} parent=0 // loop_header_branch
    %18 = sbr.rel (%p16) target = $region8
  $region5: #{tpu_custom_call.1} parent=0 // loop_body
    %s20 = ssub.s32 %s15, 1
    %s21 = ssub.s32 %s15, 2
    %s28 = sadd.s32 1, %s23
    %p29 = scmp.ge.s32.totalorder %s28, 1
    %s30 = scalar_select %p29, 0, %s28
    %s31 = sadd.s32 1, %s22
    %s32 = scalar_select %p29, %s31, %s22
    %p33 = scmp.ge.s32.totalorder %s32, 2
    %s34 = scalar_select %p33, 0, %s32
    %s35 = ssub.s32 %s22, %s34
    %s36 = ssub.s32 %s23, %s30
    %s37 = sor.u32 %s35, %s36
    %p38 = scmp.eq.s32.totalorder %s37, 0
    %s40 = sadd.s32 %s39, 1
    %s41 = scalar_select %p38, %s39, %s40
    %p44 = pneg %p38
    %p45 = scmp.eq.s32.totalorder %s15, 1
    %p46 = por %p44, %p45
    %p47 = scmp.ne.s32.totalorder %s39, %s42
    %p48 = scmp.eq.s32.totalorder %s15, 0
    %p49 = por %p47, %p48
    %p50 = scmp.ne.s32.totalorder %s39, %s42
    %p51 = scmp.eq.s32.totalorder %s20, 1
    %p52 = por %p50, %p51
    %p53 = scmp.ne.s32.totalorder %s42, %s43
    %p54 = scmp.eq.s32.totalorder %s20, 0
    %p55 = por %p53, %p54
    %p56 = scmp.ne.s32.totalorder %s42, %s43
    %p57 = scmp.eq.s32.totalorder %s21, 1
    %p58 = por %p56, %p57
    %p60 = scmp.ne.s32.totalorder %s43, %s59
    %p61 = scmp.eq.s32.totalorder %s21, 0
    %p62 = por %p60, %p61
    %s64 = sadd.s32 %s63, 1
    %p67 = scmp.eq.s32.totalorder %s15, 1
    %p68 = scmp.ne.s32.totalorder %s63, %s65
    %p69 = scmp.eq.s32.totalorder %s15, 0
    %p70 = por %p68, %p69
    %p71 = scmp.ne.s32.totalorder %s63, %s65
    %p72 = scmp.eq.s32.totalorder %s20, 1
    %p73 = por %p71, %p72
    %p74 = scmp.ne.s32.totalorder %s65, %s66
    %p75 = scmp.eq.s32.totalorder %s20, 0
    %p76 = por %p74, %p75
    %p77 = scmp.ne.s32.totalorder %s65, %s66
    %p78 = scmp.eq.s32.totalorder %s21, 1
    %p79 = por %p77, %p78
    %p81 = scmp.ne.s32.totalorder %s66, %s80
    %p82 = scmp.eq.s32.totalorder %s21, 0
    %p83 = por %p81, %p82
    %s85 = sadd.s32 %s84, 1
    %p88 = scmp.eq.s32.totalorder %s15, 1
    %p89 = scmp.ne.s32.totalorder %s84, %s86
    %p90 = scmp.eq.s32.totalorder %s15, 0
    %p91 = por %p89, %p90
    %p92 = scmp.ne.s32.totalorder %s84, %s86
    %p93 = scmp.eq.s32.totalorder %s20, 1
    %p94 = por %p92, %p93
    %p95 = scmp.ne.s32.totalorder %s86, %s87
    %p96 = scmp.eq.s32.totalorder %s20, 0
    %p97 = por %p95, %p96
    %p98 = scmp.ne.s32.totalorder %s86, %s87
    %p99 = scmp.eq.s32.totalorder %s21, 1
    %p100 = por %p98, %p99
    %p102 = scmp.ne.s32.totalorder %s87, %s101
    %p103 = scmp.eq.s32.totalorder %s21, 0
    %p104 = por %p102, %p103
    %s106 = sadd.s32 %s105, 1
    %p109 = scmp.eq.s32.totalorder %s15, 1
    %p110 = scmp.ne.s32.totalorder %s105, %s107
    %p111 = scmp.eq.s32.totalorder %s15, 0
    %p112 = por %p110, %p111
    %p113 = scmp.ne.s32.totalorder %s105, %s107
    %p114 = scmp.eq.s32.totalorder %s20, 1
    %p115 = por %p113, %p114
    %p116 = scmp.ne.s32.totalorder %s107, %s108
    %p117 = scmp.eq.s32.totalorder %s20, 0
    %p118 = por %p116, %p117
    %p119 = scmp.ne.s32.totalorder %s107, %s108
    %p120 = scmp.eq.s32.totalorder %s21, 1
    %p121 = por %p119, %p120
    %p123 = scmp.ne.s32.totalorder %s108, %s122
    %p124 = scmp.eq.s32.totalorder %s21, 0
    %p125 = por %p123, %p124
    %s127 = sadd.s32 %s126, 1
    %p130 = scmp.eq.s32.totalorder %s15, 1
    %p131 = scmp.ne.s32.totalorder %s126, %s128
    %p132 = scmp.eq.s32.totalorder %s15, 0
    %p133 = por %p131, %p132
    %p134 = scmp.ne.s32.totalorder %s126, %s128
    %p135 = scmp.eq.s32.totalorder %s20, 1
    %p136 = por %p134, %p135
    %p137 = scmp.ne.s32.totalorder %s128, %s129
    %p138 = scmp.eq.s32.totalorder %s20, 0
    %p139 = por %p137, %p138
    %p140 = scmp.ne.s32.totalorder %s128, %s129
    %p141 = scmp.eq.s32.totalorder %s21, 1
    %p142 = por %p140, %p141
    %p144 = scmp.ne.s32.totalorder %s129, %s143
    %p145 = scmp.eq.s32.totalorder %s21, 0
    %p146 = por %p144, %p145
    %s148 = sadd.s32 %s147, 1
    %p151 = scmp.eq.s32.totalorder %s15, 1
    %p152 = scmp.ne.s32.totalorder %s147, %s149
    %p153 = scmp.eq.s32.totalorder %s15, 0
    %p154 = por %p152, %p153
    %p155 = scmp.ne.s32.totalorder %s147, %s149
    %p156 = scmp.eq.s32.totalorder %s20, 1
    %p157 = por %p155, %p156
    %p158 = scmp.ne.s32.totalorder %s149, %s150
    %p159 = scmp.eq.s32.totalorder %s20, 0
    %p160 = por %p158, %p159
    %p161 = scmp.ne.s32.totalorder %s149, %s150
    %p162 = scmp.eq.s32.totalorder %s21, 1
    %p163 = por %p161, %p162
    %p165 = scmp.ne.s32.totalorder %s150, %s164
    %p166 = scmp.eq.s32.totalorder %s21, 0
    %p167 = por %p165, %p166
    %s169 = sadd.s32 %s168, 1
    %p172 = scmp.eq.s32.totalorder %s15, 1
    %p173 = scmp.ne.s32.totalorder %s168, %s170
    %p174 = scmp.eq.s32.totalorder %s15, 0
    %p175 = por %p173, %p174
    %p176 = scmp.ne.s32.totalorder %s168, %s170
    %p177 = scmp.eq.s32.totalorder %s20, 1
    %p178 = por %p176, %p177
    %p179 = scmp.ne.s32.totalorder %s170, %s171
    %p180 = scmp.eq.s32.totalorder %s20, 0
    %p181 = por %p179, %p180
    %p182 = scmp.ne.s32.totalorder %s170, %s171
    %p183 = scmp.eq.s32.totalorder %s21, 1
    %p184 = por %p182, %p183
    %p186 = scmp.ne.s32.totalorder %s171, %s185
    %p187 = scmp.eq.s32.totalorder %s21, 0
    %p188 = por %p186, %p187
    %s189 = ssub.s32 %s22, %s34
    %s190 = ssub.s32 %s23, %s30
    %s191 = sor.u32 %s189, %s190
    %p192 = scmp.eq.s32.totalorder %s191, 0
    %s194 = sadd.s32 %s193, 1
    %s195 = scalar_select %p192, %s193, %s194
    %p198 = pneg %p192
    %p199 = scmp.eq.s32.totalorder %s15, 1
    %p200 = por %p198, %p199
    %p201 = scmp.ne.s32.totalorder %s193, %s196
    %p202 = scmp.eq.s32.totalorder %s15, 0
    %p203 = por %p201, %p202
    %p204 = scmp.ne.s32.totalorder %s193, %s196
    %p205 = scmp.eq.s32.totalorder %s20, 1
    %p206 = por %p204, %p205
    %p207 = scmp.ne.s32.totalorder %s196, %s197
    %p208 = scmp.eq.s32.totalorder %s20, 0
    %p209 = por %p207, %p208
    %p210 = scmp.ne.s32.totalorder %s196, %s197
    %p211 = scmp.eq.s32.totalorder %s21, 1
    %p212 = por %p210, %p211
    %p214 = scmp.ne.s32.totalorder %s197, %s213
    %p215 = scmp.eq.s32.totalorder %s21, 0
    %p216 = por %p214, %p215
    %s217 = ssub.s32 %s22, %s34
    %s218 = ssub.s32 %s23, %s30
    %s219 = sor.u32 %s217, %s218
    %p220 = scmp.eq.s32.totalorder %s219, 0
    %s222 = sadd.s32 %s221, 1
    %s223 = scalar_select %p220, %s221, %s222
    %p226 = pneg %p220
    %p227 = scmp.eq.s32.totalorder %s15, 1
    %p228 = por %p226, %p227
    %p229 = scmp.ne.s32.totalorder %s221, %s224
    %p230 = scmp.eq.s32.totalorder %s15, 0
    %p231 = por %p229, %p230
    %p232 = scmp.ne.s32.totalorder %s221, %s224
    %p233 = scmp.eq.s32.totalorder %s20, 1
    %p234 = por %p232, %p233
    %p235 = scmp.ne.s32.totalorder %s224, %s225
    %p236 = scmp.eq.s32.totalorder %s20, 0
    %p237 = por %p235, %p236
    %p238 = scmp.ne.s32.totalorder %s224, %s225
    %p239 = scmp.eq.s32.totalorder %s21, 1
    %p240 = por %p238, %p239
    %p242 = scmp.ne.s32.totalorder %s225, %s241
    %p243 = scmp.eq.s32.totalorder %s21, 0
    %p244 = por %p242, %p243
    %p245 = scmp.le.s32.totalorder 1, %s15
    %p246 = scmp.lt.s32.totalorder %s15, 3
    %p247 = pnand %p245, %p246
    %p248 = pneg %p247
    // Predicated region
    $region9: #{tpu_custom_call.1} parent=5 // pred_check
      _
    $region10: #{tpu_custom_call.1} parent=5 // pred_check_branch
      %250 = sbr.rel (%p247) target = $region12
    $region11: #{tpu_custom_call.1} parent=5 // pred_region
      %s251 = ssub.s32 %s15, 1
      // Predicated region
      $region13: #{tpu_custom_call.1} parent=11 // pred_check
        %p252 = pneg %p76
      $region14: #{tpu_custom_call.1} parent=11 // pred_check_branch
        %254 = sbr.rel (%p252) target = $region16
      $region15: #{tpu_custom_call.1} parent=11 // pred_region
        _
      $region16: #{tpu_custom_call.1} parent=11 // pred_fallthru
        _
      // Predicated region
      $region17: #{tpu_custom_call.1} parent=11 // pred_check
        %p255 = pneg %p97
      $region18: #{tpu_custom_call.1} parent=11 // pred_check_branch
        %257 = sbr.rel (%p255) target = $region20
      $region19: #{tpu_custom_call.1} parent=11 // pred_region
        _
      $region20: #{tpu_custom_call.1} parent=11 // pred_fallthru
        _
      // Predicated region
      $region21: #{tpu_custom_call.1} parent=11 // pred_check
        %p258 = pneg %p118
      $region22: #{tpu_custom_call.1} parent=11 // pred_check_branch
        %260 = sbr.rel (%p258) target = $region24
      $region23: #{tpu_custom_call.1} parent=11 // pred_region
        _
      $region24: #{tpu_custom_call.1} parent=11 // pred_fallthru
        _
      // Predicated region
      $region25: #{tpu_custom_call.1} parent=11 // pred_check
        %p261 = pneg %p139
      $region26: #{tpu_custom_call.1} parent=11 // pred_check_branch
        %263 = sbr.rel (%p261) target = $region28
      $region27: #{tpu_custom_call.1} parent=11 // pred_region
        _
      $region28: #{tpu_custom_call.1} parent=11 // pred_fallthru
        _
      // Predicated region
      $region29: #{tpu_custom_call.1} parent=11 // pred_check
        %p264 = pneg %p160
      $region30: #{tpu_custom_call.1} parent=11 // pred_check_branch
        %266 = sbr.rel (%p264) target = $region32
      $region31: #{tpu_custom_call.1} parent=11 // pred_region
        _
      $region32: #{tpu_custom_call.1} parent=11 // pred_fallthru
        _
      // Predicated region
      $region33: #{tpu_custom_call.1} parent=11 // pred_check
        %p267 = pneg %p181
      $region34: #{tpu_custom_call.1} parent=11 // pred_check_branch
        %269 = sbr.rel (%p267) target = $region36
      $region35: #{tpu_custom_call.1} parent=11 // pred_region
        _
      $region36: #{tpu_custom_call.1} parent=11 // pred_fallthru
        _
    $region12: #{tpu_custom_call.1} parent=5 // pred_fallthru
      _
    %p270 = scmp.lt.s32.totalorder %s15, 2
    // Predicated region
    $region37: #{tpu_custom_call.1} parent=5 // pred_check
      %p271 = pneg %p270
    $region38: #{tpu_custom_call.1} parent=5 // pred_check_branch
      %273 = sbr.rel (%p271) target = $region40
    $region39: #{tpu_custom_call.1} parent=5 // pred_region
      // Predicated region
      $region41: #{tpu_custom_call.1} parent=39 // pred_check
        %p274 = pneg %p49
      $region42: #{tpu_custom_call.1} parent=39 // pred_check_branch
        %276 = sbr.rel (%p274) target = $region44
      $region43: #{tpu_custom_call.1} parent=39 // pred_region
        %s277 = smul.u32 4, %s23
        %p278 = scmp.lt.s32.totalorder %s22, 1
        %s279 = scalar_select %p278, %s22, 1
        %p280 = scmp.lt.s32.totalorder %s277, 3
        %s281 = scalar_select %p280, %s277, 3
        %s282 = smul.addr %s279, 4
        %s283 = sadd.s32 %s281, %s282
        %s284 = smul.addr %s283, 8
        %s285 = scalar_lea.vmem %s0, %s284
        %s286 = smul.u32 4, %s23
      $region44: #{tpu_custom_call.1} parent=39 // pred_fallthru
        _
    $region40: #{tpu_custom_call.1} parent=5 // pred_fallthru
      _
    %p287 = scmp.le.s32.totalorder 1, %s15
    %p288 = scmp.lt.s32.totalorder %s15, 3
    %p289 = pnand %p287, %p288
    %p290 = pneg %p289
    // Predicated region
    $region45: #{tpu_custom_call.1} parent=5 // pred_check
      _
    $region46: #{tpu_custom_call.1} parent=5 // pred_check_branch
      %292 = sbr.rel (%p289) target = $region48
    $region47: #{tpu_custom_call.1} parent=5 // pred_region
      %s293 = ssub.s32 %s15, 1
      %s294 = smul.u32 4, %s25
      %p295 = scmp.lt.s32.totalorder %s24, 1
      %s296 = scalar_select %p295, %s24, 1
      %p297 = scmp.lt.s32.totalorder %s294, 3
      %s298 = scalar_select %p297, %s294, 3
      %s299 = smul.addr %s296, 4
      %s300 = sadd.s32 %s298, %s299
      %s301 = smul.addr %s300, 8
      %s302 = scalar_lea.vmem %s0, %s301
      %p303 = pneg %p55
      %p304 = pneg %p52
      %p305 = pneg %p76
      %p306 = pneg %p73
      %p307 = pneg %p97
      %p308 = pneg %p94
      %p309 = pneg %p118
      %p310 = pneg %p115
      %p311 = pneg %p139
      %p312 = pneg %p136
      %p313 = pneg %p160
      %p314 = pneg %p157
      %p315 = pneg %p181
      %p316 = pneg %p178
      %p317 = pneg %p209
      %p318 = pneg %p206
      %s319 = smul.u32 4, %s25
      %p320 = scmp.lt.s32.totalorder %s24, 1
      %s321 = scalar_select %p320, %s24, 1
      %p322 = scmp.lt.s32.totalorder %s319, 3
      %s323 = scalar_select %p322, %s319, 3
      %s324 = smul.addr %s321, 16
      %s325 = sadd.s32 %s323, %s324
      %s326 = smul.addr %s325, 4
      %s327 = scalar_lea.vmem %s7, %s326
      %p328 = pneg %p237
      %p329 = pneg %p234
      %s330 = smul.u32 4, %s25
      %p331 = scmp.lt.s32.totalorder %s24, 1
      %s332 = scalar_select %p331, %s24, 1
      %p333 = scmp.lt.s32.totalorder %s330, 3
      %s334 = scalar_select %p333, %s330, 3
      %s335 = smul.addr %s332, 16
      %s336 = sadd.s32 %s334, %s335
      %s337 = smul.addr %s336, 4
      %s338 = scalar_lea.vmem %s8, %s337
      %s339 = smul.u32 4, %s25
      %p340 = scmp.lt.s32.totalorder %s24, 1
      %s341 = scalar_select %p340, %s24, 1
      %p342 = scmp.lt.s32.totalorder %s339, 3
      %s343 = scalar_select %p342, %s339, 3
      %s344 = smul.addr %s341, 4
      %s345 = sadd.s32 %s343, %s344
      %s346 = smul.addr %s345, 8
      %s347 = scalar_lea.vmem %s0, %s346
      %s348 = smul.u32 4, %s25
      %s349 = smul.u32 4, %s25
      %p350 = scmp.lt.s32.totalorder %s24, 1
      %s351 = scalar_select %p350, %s24, 1
      %p352 = scmp.lt.s32.totalorder %s349, 3
      %s353 = scalar_select %p352, %s349, 3
      %s354 = smul.addr %s351, 16
      %s355 = sadd.s32 %s353, %s354
      %s356 = smul.addr %s355, 4
      %s357 = scalar_lea.vmem %s7, %s356
      %s358 = smul.u32 4, %s25
      %s359 = smul.u32 4, %s25
      %p360 = scmp.lt.s32.totalorder %s24, 1
      %s361 = scalar_select %p360, %s24, 1
      %p362 = scmp.lt.s32.totalorder %s359, 3
      %s363 = scalar_select %p362, %s359, 3
      %s364 = smul.addr %s361, 16
      %s365 = sadd.s32 %s363, %s364
      %s366 = smul.addr %s365, 4
      %s367 = scalar_lea.vmem %s8, %s366
      %s368 = smul.u32 4, %s25
      %v370 = vld [vmem:[%s347] sm:$0xff]
      %v371 = vld [vmem:[%s347 + $0x8] sm:$0xff]
      %v372 = vld [vmem:[%s347 + $0x10] sm:$0xff]
      %v373 = vld [vmem:[%s347 + $0x18] sm:$0xff]
      %v374 = vld [vmem:[%s1] sm:$0x1]
      %v375 = vld [vmem:[%s2] sm:$0x1]
      %vm376 = vcmask 261120
      %v377 = vsel %vm376, %v370, 0.0
      %378 = vadd.xlane.f32.xlu0 %v377
      %v379 = vpop.xlane.xlu0 %378
      %v380 = vsel %vm376, %v371, 0.0
      %381 = vadd.xlane.f32.xlu0 %v380
      %v382 = vpop.xlane.xlu0 %381
      %v383 = vsel %vm376, %v372, 0.0
      %384 = vadd.xlane.f32.xlu0 %v383
      %v385 = vpop.xlane.xlu0 %384
      %v386 = vsel %vm376, %v373, 0.0
      %387 = vadd.xlane.f32.xlu0 %v386
      %v388 = vpop.xlane.xlu0 %387
      %v389 = vrcp.pop 32.0
      %v390 = vmul.f32 32.0, %v389
      %v391 = vsub.f32 1.0, %v390
      %v392 = vmul.f32 %v389, %v391
      %v393 = vadd.f32 %v389, %v392
      %vm394 = vweird.f32 %v389
      %v395 = vsel %vm394, %v389, %v393
      %v396 = vmul.f32 %v379, %v395
      %v397 = vmul.f32 %v382, %v395
      %v398 = vmul.f32 %v385, %v395
      %v399 = vmul.f32 %v388, %v395
      %v400 = vsub.f32 %v370, %v396
      %v401 = vsub.f32 %v371, %v397
      %v402 = vsub.f32 %v372, %v398
      %v403 = vsub.f32 %v373, %v399
      %v404 = vmul.f32 %v400, %v400
      %v405 = vmul.f32 %v401, %v401
      %v406 = vmul.f32 %v402, %v402
      %v407 = vmul.f32 %v403, %v403
      %v408 = vsel %vm376, %v404, 0.0
      %409 = vadd.xlane.f32.xlu0 %v408
      %v410 = vpop.xlane.xlu0 %409
      %v411 = vsel %vm376, %v405, 0.0
      %412 = vadd.xlane.f32.xlu0 %v411
      %v413 = vpop.xlane.xlu0 %412
      %v414 = vsel %vm376, %v406, 0.0
      %415 = vadd.xlane.f32.xlu0 %v414
      %v416 = vpop.xlane.xlu0 %415
      %v417 = vsel %vm376, %v407, 0.0
      %418 = vadd.xlane.f32.xlu0 %v417
      %v419 = vpop.xlane.xlu0 %418
      %v420 = vmul.f32 %v410, %v395
      %v421 = vmul.f32 %v413, %v395
      %v422 = vmul.f32 %v416, %v395
      %v423 = vmul.f32 %v419, %v395
      %v424 = vadd.f32 %v420, 1e-05
      %v425 = vadd.f32 %v421, 1e-05
      %v426 = vadd.f32 %v422, 1e-05
      %v427 = vadd.f32 %v423, 1e-05
      %v428 = vrsqrt.pop %v424
      %v429 = vmul.f32 %v428, %v424
      %v430 = vmul.f32 %v429, %v428
      %v431 = vmul.f32 0.5, %v430
      %v432 = vsub.f32 1.5, %v431
      %v433 = vmul.f32 %v428, %v432
      %vm434 = vweird.f32 %v424
      %vm435 = vweird.f32 %v428
      %vm436 = vmor %vm434, %vm435
      %v437 = vsel %vm436, %v428, %v433
      %v438 = vrsqrt.pop %v425
      %v439 = vmul.f32 %v438, %v425
      %v440 = vmul.f32 %v439, %v438
      %v441 = vmul.f32 0.5, %v440
      %v442 = vsub.f32 1.5, %v441
      %v443 = vmul.f32 %v438, %v442
      %vm444 = vweird.f32 %v425
      %vm445 = vweird.f32 %v438
      %vm446 = vmor %vm444, %vm445
      %v447 = vsel %vm446, %v438, %v443
      %v448 = vrsqrt.pop %v426
      %v449 = vmul.f32 %v448, %v426
      %v450 = vmul.f32 %v449, %v448
      %v451 = vmul.f32 0.5, %v450
      %v452 = vsub.f32 1.5, %v451
      %v453 = vmul.f32 %v448, %v452
      %vm454 = vweird.f32 %v426
      %vm455 = vweird.f32 %v448
      %vm456 = vmor %vm454, %vm455
      %v457 = vsel %vm456, %v448, %v453
      %v458 = vrsqrt.pop %v427
      %v459 = vmul.f32 %v458, %v427
      %v460 = vmul.f32 %v459, %v458
      %v461 = vmul.f32 0.5, %v460
      %v462 = vsub.f32 1.5, %v461
      %v463 = vmul.f32 %v458, %v462
      %vm464 = vweird.f32 %v427
      %vm465 = vweird.f32 %v458
      %vm466 = vmor %vm464, %vm465
      %v467 = vsel %vm466, %v458, %v463
      %v468 = vmul.f32 %v400, %v437
      %v469 = vmul.f32 %v401, %v447
      %v470 = vmul.f32 %v402, %v457
      %v471 = vmul.f32 %v403, %v467
      %v473 = vperm.slane %v374, 0
      %v475 = vmul.f32 %v468, %v473
      %v476 = vmul.f32 %v469, %v473
      %v477 = vmul.f32 %v470, %v473
      %v478 = vmul.f32 %v471, %v473
      %v480 = vperm.slane %v375, 0
      %v482 = vadd.f32 %v475, %v480
      %v483 = vadd.f32 %v476, %v480
      %v484 = vadd.f32 %v477, %v480
      %v485 = vadd.f32 %v478, %v480
      %v486 = vpack.c.bf16 %v483, %v482
      %v487 = vpack.c.bf16 %v485, %v484
      %v488 = vld [vmem:[%s3] sm:$0xf]
      %v489 = vld [vmem:[%s3 + $0x4] sm:$0xf]
      %v490 = vld [vmem:[%s3 + $0x8] sm:$0xf]
      %v491 = vld [vmem:[%s3 + $0xc] sm:$0xf]
      %v492 = vld [vmem:[%s5] sm:$0x1]
      %v494 = vperm.slane %v492, 0
      %v500 = vunpack.c.l.b16 %v488
      %v501 = vunpack.c.l.b16 %v489
      %v502 = vunpack.c.l.b16 %v490
      %v503 = vunpack.c.l.b16 %v491
      %v504 = vpack.c.b16 %v501, %v500
      %v505 = vpack.c.b16 %v503, %v502
      %v509 = vsel %vm376, %v486, 0
      %v512 = vsel %vm376, %v487, 0
      %514 = vmatpush.bf16.msra.mxu0 0
      %515 = vmatpush.bf16.msra.mxu0 0
      %516 = vmatpush.bf16.msra.mxu0 0
      %517 = vmatpush.bf16.msra.mxu0 0
      %518 = vmatpush.bf16.msra.mxu0 0
      %519 = vmatpush.bf16.msra.mxu0 0
      %520 = vmatpush.bf16.msra.mxu0 %v505
      %521 = vmatpush.bf16.msra.mxu0 %v504
      %522 = vmatmul.bf16.gmra.mxu0 %v509
      %v523 = vpop.f32.mrf.mxu0
      %v524 = vadd.f32 %v494, %v523
      %v525 = vpop.f32.mrf.mxu0
      %v526 = vadd.f32 %v494, %v525
      %527 = vmatmul.bf16.gmra.mxu0 %v512
      %v528 = vpop.f32.mrf.mxu0
      %v529 = vadd.f32 %v494, %v528
      %v530 = vpop.f32.mrf.mxu0
      %v531 = vadd.f32 %v494, %v530
      %532 = vdwg.mxu0
      %v533 = vpack.c.bf16 %v524, %v524
      %v534 = vpack.c.bf16 %v526, %v526
      %v535 = vpack.c.bf16 %v529, %v529
      %v536 = vpack.c.bf16 %v531, %v531
      %vm537 = vcmask 60416
      %538 = vst.msk [vmem:[%s357] sm:$0xf] %vm537, %v533
      %539 = vst.msk [vmem:[%s357 + $0x4] sm:$0xf] %vm537, %v534
      %540 = vst.msk [vmem:[%s357 + $0x8] sm:$0xf] %vm537, %v535
      %541 = vst.msk [vmem:[%s357 + $0xc] sm:$0xf] %vm537, %v536
      %v542 = vld [vmem:[%s4] sm:$0xf]
      %v543 = vld [vmem:[%s4 + $0x4] sm:$0xf]
      %v544 = vld [vmem:[%s4 + $0x8] sm:$0xf]
      %v545 = vld [vmem:[%s4 + $0xc] sm:$0xf]
      %v546 = vld [vmem:[%s6] sm:$0x1]
      %v548 = vperm.slane %v546, 0
      %v554 = vunpack.c.l.b16 %v542
      %v555 = vunpack.c.l.b16 %v543
      %v556 = vunpack.c.l.b16 %v544
      %v557 = vunpack.c.l.b16 %v545
      %v558 = vpack.c.b16 %v555, %v554
      %v559 = vpack.c.b16 %v557, %v556
      %562 = vmatpush.bf16.msra.mxu0 0
      %563 = vmatpush.bf16.msra.mxu0 0
      %564 = vmatpush.bf16.msra.mxu0 0
      %565 = vmatpush.bf16.msra.mxu0 0
      %566 = vmatpush.bf16.msra.mxu0 0
      %567 = vmatpush.bf16.msra.mxu0 0
      %568 = vmatpush.bf16.msra.mxu0 %v559
      %569 = vmatpush.bf16.msra.mxu0 %v558
      %570 = vmatmul.bf16.gmra.mxu0 %v509
      %v571 = vpop.f32.mrf.mxu0
      %v572 = vadd.f32 %v548, %v571
      %v573 = vpop.f32.mrf.mxu0
      %v574 = vadd.f32 %v548, %v573
      %575 = vmatmul.bf16.gmra.mxu0 %v512
      %v576 = vpop.f32.mrf.mxu0
      %v577 = vadd.f32 %v548, %v576
      %v578 = vpop.f32.mrf.mxu0
      %v579 = vadd.f32 %v548, %v578
      %580 = vdwg.mxu0
      %v581 = vpack.c.bf16 %v572, %v572
      %v582 = vpack.c.bf16 %v574, %v574
      %v583 = vpack.c.bf16 %v577, %v577
      %v584 = vpack.c.bf16 %v579, %v579
      %585 = vst.msk [vmem:[%s367] sm:$0xf] %vm537, %v581
      %586 = vst.msk [vmem:[%s367 + $0x4] sm:$0xf] %vm537, %v582
      %587 = vst.msk [vmem:[%s367 + $0x8] sm:$0xf] %vm537, %v583
      %588 = vst.msk [vmem:[%s367 + $0xc] sm:$0xf] %vm537, %v584
      %s589 = scalar_lea.vmem %s3, 16
      %v590 = vld [vmem:[%s589] sm:$0xf]
      %v591 = vld [vmem:[%s589 + $0x4] sm:$0xf]
      %v592 = vld [vmem:[%s589 + $0x8] sm:$0xf]
      %v593 = vld [vmem:[%s589 + $0xc] sm:$0xf]
      %s594 = scalar_lea.vmem %s5, 1
      %v595 = vld [vmem:[%s594] sm:$0x1]
      %v597 = vperm.slane %v595, 0
      %v603 = vunpack.c.l.b16 %v590
      %v604 = vunpack.c.l.b16 %v591
      %v605 = vunpack.c.l.b16 %v592
      %v606 = vunpack.c.l.b16 %v593
      %v607 = vpack.c.b16 %v604, %v603
      %v608 = vpack.c.b16 %v606, %v605
      %611 = vmatpush.bf16.msra.mxu0 0
      %612 = vmatpush.bf16.msra.mxu0 0
      %613 = vmatpush.bf16.msra.mxu0 0
      %614 = vmatpush.bf16.msra.mxu0 0
      %615 = vmatpush.bf16.msra.mxu0 0
      %616 = vmatpush.bf16.msra.mxu0 0
      %617 = vmatpush.bf16.msra.mxu0 %v608
      %618 = vmatpush.bf16.msra.mxu0 %v607
      %619 = vmatmul.bf16.gmra.mxu0 %v509
      %v620 = vpop.f32.mrf.mxu0
      %v621 = vadd.f32 %v597, %v620
      %v622 = vpop.f32.mrf.mxu0
      %v623 = vadd.f32 %v597, %v622
      %624 = vmatmul.bf16.gmra.mxu0 %v512
      %v625 = vpop.f32.mrf.mxu0
      %v626 = vadd.f32 %v597, %v625
      %v627 = vpop.f32.mrf.mxu0
      %v628 = vadd.f32 %v597, %v627
      %629 = vdwg.mxu0
      %v630 = vpack.c.bf16 %v621, %v621
      %v631 = vpack.c.bf16 %v623, %v623
      %v632 = vpack.c.bf16 %v626, %v626
      %v633 = vpack.c.bf16 %v628, %v628
      %s634 = scalar_lea.vmem %s357, 16
      %635 = vst.msk [vmem:[%s634] sm:$0xf] %vm537, %v630
      %636 = vst.msk [vmem:[%s634 + $0x4] sm:$0xf] %vm537, %v631
      %637 = vst.msk [vmem:[%s634 + $0x8] sm:$0xf] %vm537, %v632
      %638 = vst.msk [vmem:[%s634 + $0xc] sm:$0xf] %vm537, %v633
      %s639 = scalar_lea.vmem %s4, 16
      %v640 = vld [vmem:[%s639] sm:$0xf]
      %v641 = vld [vmem:[%s639 + $0x4] sm:$0xf]
      %v642 = vld [vmem:[%s639 + $0x8] sm:$0xf]
      %v643 = vld [vmem:[%s639 + $0xc] sm:$0xf]
      %s644 = scalar_lea.vmem %s6, 1
      %v645 = vld [vmem:[%s644] sm:$0x1]
      %v647 = vperm.slane %v645, 0
      %v653 = vunpack.c.l.b16 %v640
      %v654 = vunpack.c.l.b16 %v641
      %v655 = vunpack.c.l.b16 %v642
      %v656 = vunpack.c.l.b16 %v643
      %v657 = vpack.c.b16 %v654, %v653
      %v658 = vpack.c.b16 %v656, %v655
      %661 = vmatpush.bf16.msra.mxu0 0
      %662 = vmatpush.bf16.msra.mxu0 0
      %663 = vmatpush.bf16.msra.mxu0 0
      %664 = vmatpush.bf16.msra.mxu0 0
      %665 = vmatpush.bf16.msra.mxu0 0
      %666 = vmatpush.bf16.msra.mxu0 0
      %667 = vmatpush.bf16.msra.mxu0 %v658
      %668 = vmatpush.bf16.msra.mxu0 %v657
      %669 = vmatmul.bf16.gmra.mxu0 %v509
      %v670 = vpop.f32.mrf.mxu0
      %v671 = vadd.f32 %v647, %v670
      %v672 = vpop.f32.mrf.mxu0
      %v673 = vadd.f32 %v647, %v672
      %674 = vmatmul.bf16.gmra.mxu0 %v512
      %v675 = vpop.f32.mrf.mxu0
      %v676 = vadd.f32 %v647, %v675
      %v677 = vpop.f32.mrf.mxu0
      %v678 = vadd.f32 %v647, %v677
      %679 = vdwg.mxu0
      %v680 = vpack.c.bf16 %v671, %v671
      %v681 = vpack.c.bf16 %v673, %v673
      %v682 = vpack.c.bf16 %v676, %v676
      %v683 = vpack.c.bf16 %v678, %v678
      %s684 = scalar_lea.vmem %s367, 16
      %685 = vst.msk [vmem:[%s684] sm:$0xf] %vm537, %v680
      %686 = vst.msk [vmem:[%s684 + $0x4] sm:$0xf] %vm537, %v681
      %687 = vst.msk [vmem:[%s684 + $0x8] sm:$0xf] %vm537, %v682
      %688 = vst.msk [vmem:[%s684 + $0xc] sm:$0xf] %vm537, %v683
      %s689 = scalar_lea.vmem %s3, 32
      %v690 = vld [vmem:[%s689] sm:$0xf]
      %v691 = vld [vmem:[%s689 + $0x4] sm:$0xf]
      %v692 = vld [vmem:[%s689 + $0x8] sm:$0xf]
      %v693 = vld [vmem:[%s689 + $0xc] sm:$0xf]
      %s694 = scalar_lea.vmem %s5, 2
      %v695 = vld [vmem:[%s694] sm:$0x1]
      %v697 = vperm.slane %v695, 0
      %v703 = vunpack.c.l.b16 %v690
      %v704 = vunpack.c.l.b16 %v691
      %v705 = vunpack.c.l.b16 %v692
      %v706 = vunpack.c.l.b16 %v693
      %v707 = vpack.c.b16 %v704, %v703
      %v708 = vpack.c.b16 %v706, %v705
      %711 = vmatpush.bf16.msra.mxu0 0
      %712 = vmatpush.bf16.msra.mxu0 0
      %713 = vmatpush.bf16.msra.mxu0 0
      %714 = vmatpush.bf16.msra.mxu0 0
      %715 = vmatpush.bf16.msra.mxu0 0
      %716 = vmatpush.bf16.msra.mxu0 0
      %717 = vmatpush.bf16.msra.mxu0 %v708
      %718 = vmatpush.bf16.msra.mxu0 %v707
      %719 = vmatmul.bf16.gmra.mxu0 %v509
      %v720 = vpop.f32.mrf.mxu0
      %v721 = vadd.f32 %v697, %v720
      %v722 = vpop.f32.mrf.mxu0
      %v723 = vadd.f32 %v697, %v722
      %724 = vmatmul.bf16.gmra.mxu0 %v512
      %v725 = vpop.f32.mrf.mxu0
      %v726 = vadd.f32 %v697, %v725
      %v727 = vpop.f32.mrf.mxu0
      %v728 = vadd.f32 %v697, %v727
      %729 = vdwg.mxu0
      %v730 = vpack.c.bf16 %v721, %v721
      %v731 = vpack.c.bf16 %v723, %v723
      %v732 = vpack.c.bf16 %v726, %v726
      %v733 = vpack.c.bf16 %v728, %v728
      %s734 = scalar_lea.vmem %s357, 32
      %735 = vst.msk [vmem:[%s734] sm:$0xf] %vm537, %v730
      %736 = vst.msk [vmem:[%s734 + $0x4] sm:$0xf] %vm537, %v731
      %737 = vst.msk [vmem:[%s734 + $0x8] sm:$0xf] %vm537, %v732
      %738 = vst.msk [vmem:[%s734 + $0xc] sm:$0xf] %vm537, %v733
      %s739 = scalar_lea.vmem %s4, 32
      %v740 = vld [vmem:[%s739] sm:$0xf]
      %v741 = vld [vmem:[%s739 + $0x4] sm:$0xf]
      %v742 = vld [vmem:[%s739 + $0x8] sm:$0xf]
      %v743 = vld [vmem:[%s739 + $0xc] sm:$0xf]
      %s744 = scalar_lea.vmem %s6, 2
      %v745 = vld [vmem:[%s744] sm:$0x1]
      %v747 = vperm.slane %v745, 0
      %v753 = vunpack.c.l.b16 %v740
      %v754 = vunpack.c.l.b16 %v741
      %v755 = vunpack.c.l.b16 %v742
      %v756 = vunpack.c.l.b16 %v743
      %v757 = vpack.c.b16 %v754, %v753
      %v758 = vpack.c.b16 %v756, %v755
      %761 = vmatpush.bf16.msra.mxu0 0
      %762 = vmatpush.bf16.msra.mxu0 0
      %763 = vmatpush.bf16.msra.mxu0 0
      %764 = vmatpush.bf16.msra.mxu0 0
      %765 = vmatpush.bf16.msra.mxu0 0
      %766 = vmatpush.bf16.msra.mxu0 0
      %767 = vmatpush.bf16.msra.mxu0 %v758
      %768 = vmatpush.bf16.msra.mxu0 %v757
      %769 = vmatmul.bf16.gmra.mxu0 %v509
      %v770 = vpop.f32.mrf.mxu0
      %v771 = vadd.f32 %v747, %v770
      %v772 = vpop.f32.mrf.mxu0
      %v773 = vadd.f32 %v747, %v772
      %774 = vmatmul.bf16.gmra.mxu0 %v512
      %v775 = vpop.f32.mrf.mxu0
      %v776 = vadd.f32 %v747, %v775
      %v777 = vpop.f32.mrf.mxu0
      %v778 = vadd.f32 %v747, %v777
      %779 = vdwg.mxu0
      %v780 = vpack.c.bf16 %v771, %v771
      %v781 = vpack.c.bf16 %v773, %v773
      %v782 = vpack.c.bf16 %v776, %v776
      %v783 = vpack.c.bf16 %v778, %v778
      %s784 = scalar_lea.vmem %s367, 32
      %785 = vst.msk [vmem:[%s784] sm:$0xf] %vm537, %v780
      %786 = vst.msk [vmem:[%s784 + $0x4] sm:$0xf] %vm537, %v781
      %787 = vst.msk [vmem:[%s784 + $0x8] sm:$0xf] %vm537, %v782
      %788 = vst.msk [vmem:[%s784 + $0xc] sm:$0xf] %vm537, %v783
      %s789 = scalar_lea.vmem %s3, 48
      %v790 = vld [vmem:[%s789] sm:$0xf]
      %v791 = vld [vmem:[%s789 + $0x4] sm:$0xf]
      %v792 = vld [vmem:[%s789 + $0x8] sm:$0xf]
      %v793 = vld [vmem:[%s789 + $0xc] sm:$0xf]
      %s794 = scalar_lea.vmem %s5, 3
      %v795 = vld [vmem:[%s794] sm:$0x1]
      %v797 = vperm.slane %v795, 0
      %v803 = vunpack.c.l.b16 %v790
      %v804 = vunpack.c.l.b16 %v791
      %v805 = vunpack.c.l.b16 %v792
      %v806 = vunpack.c.l.b16 %v793
      %v807 = vpack.c.b16 %v804, %v803
      %v808 = vpack.c.b16 %v806, %v805
      %811 = vmatpush.bf16.msra.mxu0 0
      %812 = vmatpush.bf16.msra.mxu0 0
      %813 = vmatpush.bf16.msra.mxu0 0
      %814 = vmatpush.bf16.msra.mxu0 0
      %815 = vmatpush.bf16.msra.mxu0 0
      %816 = vmatpush.bf16.msra.mxu0 0
      %817 = vmatpush.bf16.msra.mxu0 %v808
      %818 = vmatpush.bf16.msra.mxu0 %v807
      %819 = vmatmul.bf16.gmra.mxu0 %v509
      %v820 = vpop.f32.mrf.mxu0
      %v821 = vadd.f32 %v797, %v820
      %v822 = vpop.f32.mrf.mxu0
      %v823 = vadd.f32 %v797, %v822
      %824 = vmatmul.bf16.gmra.mxu0 %v512
      %v825 = vpop.f32.mrf.mxu0
      %v826 = vadd.f32 %v797, %v825
      %v827 = vpop.f32.mrf.mxu0
      %v828 = vadd.f32 %v797, %v827
      %829 = vdwg.mxu0
      %v830 = vpack.c.bf16 %v821, %v821
      %v831 = vpack.c.bf16 %v823, %v823
      %v832 = vpack.c.bf16 %v826, %v826
      %v833 = vpack.c.bf16 %v828, %v828
      %s834 = scalar_lea.vmem %s357, 48
      %835 = vst.msk [vmem:[%s834] sm:$0xf] %vm537, %v830
      %836 = vst.msk [vmem:[%s834 + $0x4] sm:$0xf] %vm537, %v831
      %837 = vst.msk [vmem:[%s834 + $0x8] sm:$0xf] %vm537, %v832
      %838 = vst.msk [vmem:[%s834 + $0xc] sm:$0xf] %vm537, %v833
      %s839 = scalar_lea.vmem %s4, 48
      %v840 = vld [vmem:[%s839] sm:$0xf]
      %v841 = vld [vmem:[%s839 + $0x4] sm:$0xf]
      %v842 = vld [vmem:[%s839 + $0x8] sm:$0xf]
      %v843 = vld [vmem:[%s839 + $0xc] sm:$0xf]
      %s844 = scalar_lea.vmem %s6, 3
      %v845 = vld [vmem:[%s844] sm:$0x1]
      %v847 = vperm.slane %v845, 0
      %v853 = vunpack.c.l.b16 %v840
      %v854 = vunpack.c.l.b16 %v841
      %v855 = vunpack.c.l.b16 %v842
      %v856 = vunpack.c.l.b16 %v843
      %v857 = vpack.c.b16 %v854, %v853
      %v858 = vpack.c.b16 %v856, %v855
      %861 = vmatpush.bf16.msra.mxu0 0
      %862 = vmatpush.bf16.msra.mxu0 0
      %863 = vmatpush.bf16.msra.mxu0 0
      %864 = vmatpush.bf16.msra.mxu0 0
      %865 = vmatpush.bf16.msra.mxu0 0
      %866 = vmatpush.bf16.msra.mxu0 0
      %867 = vmatpush.bf16.msra.mxu0 %v858
      %868 = vmatpush.bf16.msra.mxu0 %v857
      %869 = vmatmul.bf16.gmra.mxu0 %v509
      %v870 = vpop.f32.mrf.mxu0
      %v871 = vadd.f32 %v847, %v870
      %v872 = vpop.f32.mrf.mxu0
      %v873 = vadd.f32 %v847, %v872
      %874 = vmatmul.bf16.gmra.mxu0 %v512
      %v875 = vpop.f32.mrf.mxu0
      %v876 = vadd.f32 %v847, %v875
      %v877 = vpop.f32.mrf.mxu0
      %v878 = vadd.f32 %v847, %v877
      %879 = vdwg.mxu0
      %v880 = vpack.c.bf16 %v871, %v871
      %v881 = vpack.c.bf16 %v873, %v873
      %v882 = vpack.c.bf16 %v876, %v876
      %v883 = vpack.c.bf16 %v878, %v878
      %s884 = scalar_lea.vmem %s367, 48
      %885 = vst.msk [vmem:[%s884] sm:$0xf] %vm537, %v880
      %886 = vst.msk [vmem:[%s884 + $0x4] sm:$0xf] %vm537, %v881
      %887 = vst.msk [vmem:[%s884 + $0x8] sm:$0xf] %vm537, %v882
      %888 = vst.msk [vmem:[%s884 + $0xc] sm:$0xf] %vm537, %v883
      %s889 = smul.u32 4, %s25
      %p890 = scmp.lt.s32.totalorder %s24, 1
      %s891 = scalar_select %p890, %s24, 1
      %p892 = scmp.lt.s32.totalorder %s889, 3
      %s893 = scalar_select %p892, %s889, 3
      %s894 = smul.addr %s891, 16
      %s895 = sadd.s32 %s893, %s894
      %s896 = smul.addr %s895, 4
      %s897 = scalar_lea.vmem %s7, %s896
      %s898 = smul.u32 4, %s25
      %p899 = scmp.lt.s32.totalorder %s24, 1
      %s900 = scalar_select %p899, %s24, 1
      %p901 = scmp.lt.s32.totalorder %s898, 3
      %s902 = scalar_select %p901, %s898, 3
      %s903 = smul.addr %s900, 16
      %s904 = sadd.s32 %s902, %s903
      %s905 = smul.addr %s904, 4
      %s906 = scalar_lea.vmem %s8, %s905
      // Predicated region
      $region49: #{tpu_custom_call.1} parent=47 // pred_check
        %p907 = pneg %p206
      $region50: #{tpu_custom_call.1} parent=47 // pred_check_branch
        %909 = sbr.rel (%p907) target = $region52
      $region51: #{tpu_custom_call.1} parent=47 // pred_region
        %s910 = smul.u32 4, %s25
      $region52: #{tpu_custom_call.1} parent=47 // pred_fallthru
        _
      // Predicated region
      $region53: #{tpu_custom_call.1} parent=47 // pred_check
        %p911 = pneg %p234
      $region54: #{tpu_custom_call.1} parent=47 // pred_check_branch
        %913 = sbr.rel (%p911) target = $region56
      $region55: #{tpu_custom_call.1} parent=47 // pred_region
        %s914 = smul.u32 4, %s25
      $region56: #{tpu_custom_call.1} parent=47 // pred_fallthru
        _
    $region48: #{tpu_custom_call.1} parent=5 // pred_fallthru
      _
    %p915 = scmp.le.s32.totalorder 2, %s15
    // Predicated region
    $region57: #{tpu_custom_call.1} parent=5 // pred_check
      %p916 = pneg %p915
    $region58: #{tpu_custom_call.1} parent=5 // pred_check_branch
      %918 = sbr.rel (%p916) target = $region60
    $region59: #{tpu_custom_call.1} parent=5 // pred_region
      %s919 = ssub.s32 %s15, 2
      // Predicated region
      $region61: #{tpu_custom_call.1} parent=59 // pred_check
        %p920 = pneg %p212
      $region62: #{tpu_custom_call.1} parent=59 // pred_check_branch
        %922 = sbr.rel (%p920) target = $region64
      $region63: #{tpu_custom_call.1} parent=59 // pred_region
        %s923 = smul.u32 4, %s27
        %p924 = scmp.lt.s32.totalorder %s26, 1
        %s925 = scalar_select %p924, %s26, 1
        %p926 = scmp.lt.s32.totalorder %s923, 3
        %s927 = scalar_select %p926, %s923, 3
        %s928 = smul.addr %s925, 16
        %s929 = sadd.s32 %s927, %s928
        %s930 = smul.addr %s929, 4
        %s931 = scalar_lea.vmem %s7, %s930
      $region64: #{tpu_custom_call.1} parent=59 // pred_fallthru
        _
      // Predicated region
      $region65: #{tpu_custom_call.1} parent=59 // pred_check
        %p932 = pneg %p240
      $region66: #{tpu_custom_call.1} parent=59 // pred_check_branch
        %934 = sbr.rel (%p932) target = $region68
      $region67: #{tpu_custom_call.1} parent=59 // pred_region
        %s935 = smul.u32 4, %s27
        %p936 = scmp.lt.s32.totalorder %s26, 1
        %s937 = scalar_select %p936, %s26, 1
        %p938 = scmp.lt.s32.totalorder %s935, 3
        %s939 = scalar_select %p938, %s935, 3
        %s940 = smul.addr %s937, 16
        %s941 = sadd.s32 %s939, %s940
        %s942 = smul.addr %s941, 4
        %s943 = scalar_lea.vmem %s8, %s942
      $region68: #{tpu_custom_call.1} parent=59 // pred_fallthru
        _
    $region60: #{tpu_custom_call.1} parent=5 // pred_fallthru
      _
  $region6: #{tpu_custom_call.1} parent=0 // loop_footer
    %s19 = sadd.s32 1, %s15
  $region7: #{tpu_custom_call.1} parent=0 // loop_footer_branch
    %14 = sbr.rel target = $region3
  $region8: #{tpu_custom_call.1} parent=0 // loop_exit
    _

</llo_original>
